<compile_context>
chip_gen: v5e
topology: v5e:2x2
jax: 0.10.0
libtpu: 0.0.40
codegen_flags: <defaults>
</compile_context>

<pallas_src>
import jax
import jax.numpy as jnp
from jax import lax
from jax.experimental import pallas as pl
from jax.experimental.pallas import tpu as pltpu


def _tap_tables(sk: int, bk: int):
    """Static (di, dj, weight_index) tap lists for the three branches."""
    sp, bp = sk // 2, bk // 2
    sq = [(di, dj, (di + sp) * sk + (dj + sp))
          for di in range(-sp, sp + 1) for dj in range(-sp, sp + 1)]
    bw = [(0, dj, dj + bp) for dj in range(-bp, bp + 1)]     # 1 x bk   (along W)
    bh = [(di, 0, di + bp) for di in range(-bp, bp + 1)]     # bk x 1   (along H)
    return sq, bw, bh


def _make_kernel(gc: int, H: int, W: int, sk: int, bk: int):
    HW = H * W
    sq_taps, bw_taps, bh_taps = _tap_tables(sk, bk)
    # Largest flat-index offset any single tap can reach.
    max_off = max(abs(di) * W + abs(dj)
                  for (di, dj, _) in sq_taps + bw_taps + bh_taps)
    base = ((max_off + 127) // 128) * 128        # 128-aligned staging offset
    flat = base + HW + base                      # [zero band | image | zero band]

    def kernel(x_ref, wsq_ref, ww_ref, wh_ref, b_ref, o_ref, ssq, sw, sh):
        scratches = (ssq, sw, sh)

        # ---- zero only the pad bands (interior is fully overwritten below) --
        zero_band = jnp.zeros((gc, base), jnp.float32)
        for scr in scratches:
            scr[:, :base] = zero_band
            scr[:, base + HW:] = zero_band

        # ---- stage conv channels into padded f32 scratch (in-kernel "same"
        #      padding; staging stays f32 for v5e safety) ----------------------
        for r, scr in enumerate(scratches):
            scr[:, base:base + HW] = x_ref[0, r * gc:(r + 1) * gc, :].astype(jnp.float32)

        # ---- column masks killing horizontal wrap across flattened rows -----
        col = lax.broadcasted_iota(jnp.int32, (1, HW), 1)
        col = jnp.bitwise_and(col, W - 1) if (W & (W - 1)) == 0 else col % W
        dj_set = sorted({dj for (_, dj, _) in sq_taps + bw_taps if dj != 0})
        masks = {dj: jnp.logical_and(col + dj >= 0, col + dj < W) for dj in dj_set}

        def branch(scr, w_ref, taps, r):
            # (gc, HW) accumulator, bias broadcast along lanes from a (gc,1) col.
            acc = jnp.zeros((gc, HW), jnp.float32) + b_ref[r]
            for (di, dj, k) in taps:
                s = base + di * W + dj                    # static lane offset
                v = scr[:, s:s + HW]                      # (gc, HW) shifted load
                if dj != 0:
                    v = jnp.where(masks[dj], v, 0.0)
                acc = acc + w_ref[:, k:k + 1] * v         # (gc,1) weight column
            o_ref[0, r * gc:(r + 1) * gc, :] = acc.astype(o_ref.dtype)

        branch(ssq, wsq_ref, sq_taps, 0)   # sk x sk
        branch(sw,  ww_ref,  bw_taps, 1)   # 1 x bk
        branch(sh,  wh_ref,  bh_taps, 2)   # bk x 1

    return kernel, flat


def inception_dwconv2d(x, params, split_indexes, square_kernel_size, band_kernel_size):
    """Forward pass matching the PyTorch module (NCHW in / NCHW out)."""
    N, C, H, W = x.shape
    c_id, gc = split_indexes[0], split_indexes[1]
    sk, bk = square_kernel_size, band_kernel_size
    n_conv = 3 * gc
    HW = H * W

    if gc == 0:                       # degenerate: everything is identity
        return x

    # Weights with channels on sublanes / tap index on lanes -> per-tap (gc,1)
    # columns slice out directly inside the kernel.
    w_sq = params["w_hw"].astype(jnp.float32).reshape(gc, sk * sk)
    w_w = params["w_w"].astype(jnp.float32).reshape(gc, bk)
    w_h = params["w_h"].astype(jnp.float32).reshape(gc, bk)
    b = jnp.stack([params["b_hw"], params["b_w"], params["b_h"]]
                  ).astype(jnp.float32).reshape(3, gc, 1)

    # Only the conv-channel slab goes through the kernel; identity channels
    # bypass it entirely (with donation you would write in place instead).
    xc = x[:, c_id:].reshape(N, n_conv, HW)          # lane-dense trailing H*W

    kernel, flat = _make_kernel(gc, H, W, sk, bk)

    yc = pl.pallas_call(
        kernel,
        out_shape=jax.ShapeDtypeStruct((N, n_conv, HW), x.dtype),
        grid=(N,),
        in_specs=[
            pl.BlockSpec((1, n_conv, HW), lambda n: (n, 0, 0)),   # conv slab
            pl.BlockSpec((gc, sk * sk), lambda n: (0, 0)),        # square weights
            pl.BlockSpec((gc, bk), lambda n: (0, 0)),             # 1xK weights
            pl.BlockSpec((gc, bk), lambda n: (0, 0)),             # Kx1 weights
            pl.BlockSpec((3, gc, 1), lambda n: (0, 0, 0)),        # biases
        ],
        out_specs=pl.BlockSpec((1, n_conv, HW), lambda n: (n, 0, 0)),
        scratch_shapes=[pltpu.VMEM((gc, flat), jnp.float32)] * 3,
        compiler_params=pltpu.CompilerParams(
            dimension_semantics=("parallel",)),
    )(xc, w_sq, w_w, w_h, b)

    y_conv = yc.reshape(N, n_conv, H, W)
    if c_id > 0:
        return jnp.concatenate([x[:, :c_id], y_conv], axis=1)
    return y_conv


def init_inception_dwconv2d_params(key, in_channels=32, square_kernel_size=3,
                                   band_kernel_size=11, branch_ratio=0.125):
    gc = int(in_channels * branch_ratio)
    ks = jax.random.split(key, 6)
    params = {
        "w_hw": 0.1 * jax.random.normal(ks[0], (gc, square_kernel_size, square_kernel_size), jnp.float32),
        "b_hw": 0.1 * jax.random.normal(ks[1], (gc,), jnp.float32),
        "w_w": 0.1 * jax.random.normal(ks[2], (gc, 1, band_kernel_size), jnp.float32),
        "b_w": 0.1 * jax.random.normal(ks[3], (gc,), jnp.float32),
        "w_h": 0.1 * jax.random.normal(ks[4], (gc, band_kernel_size, 1), jnp.float32),
        "b_h": 0.1 * jax.random.normal(ks[5], (gc,), jnp.float32),
    }
    split_indexes = (in_channels - 3 * gc, gc, gc, gc)
    return params, split_indexes, square_kernel_size, band_kernel_size


def _ref_depthwise(x, weight, bias, kh, kw):
    """Pure-JAX reference (lax conv) for correctness checking."""
    C = x.shape[1]
    w = weight.reshape(C, 1, kh, kw)
    y = lax.conv_general_dilated(
        x, w, window_strides=(1, 1),
        padding=((kh // 2, kh // 2), (kw // 2, kw // 2)),
        dimension_numbers=("NCHW", "OIHW", "NCHW"), feature_group_count=C)
    return y + bias.reshape(1, C, 1, 1)


def _ref_forward(x, params, split_indexes, sk, bk):
    c_id, gc, _, _ = split_indexes
    x_id = x[:, :c_id]
    x_hw = x[:, c_id:c_id + gc]
    x_w = x[:, c_id + gc:c_id + 2 * gc]
    x_h = x[:, c_id + 2 * gc:c_id + 3 * gc]
    return jnp.concatenate([
        x_id,
        _ref_depthwise(x_hw, params["w_hw"], params["b_hw"], sk, sk),
        _ref_depthwise(x_w, params["w_w"], params["b_w"], 1, bk),
        _ref_depthwise(x_h, params["w_h"], params["b_h"], bk, 1),
    ], axis=1)


if __name__ == "__main__":
    key = jax.random.PRNGKey(0)
    k_x, k_p = jax.random.split(key)

    N, C, H, W = 2, 32, 16, 16     # in_channels=32 -> gc = 4, split = (20, 4, 4, 4)
    x = jax.random.normal(k_x, (N, C, H, W), jnp.float32)

    params, split_indexes, sk, bk = init_inception_dwconv2d_params(
        k_p, in_channels=C, square_kernel_size=3, band_kernel_size=11,
        branch_ratio=0.125)

    out = jax.block_until_ready(
        inception_dwconv2d(x, params, split_indexes, sk, bk))
    ref = jax.block_until_ready(_ref_forward(x, params, split_indexes, sk, bk))

    assert out.shape == (N, C, H, W), out.shape
    err = float(jnp.max(jnp.abs(out - ref)))
    assert jnp.allclose(out, ref, atol=1e-5, rtol=1e-5), err

    print("KERNEL_OK")
</pallas_src>

<mosaic_0001>
module attributes {stable_mosaic.version = 11 : i64} {
  func.func @kernel(%arg0: i32, %arg1: memref<1x12x256xf32, #tpu.memory_space<vmem>>, %arg2: memref<4x9xf32, #tpu.memory_space<vmem>>, %arg3: memref<4x11xf32, #tpu.memory_space<vmem>>, %arg4: memref<4x11xf32, #tpu.memory_space<vmem>>, %arg5: memref<3x4x1xf32, #tpu.memory_space<vmem>>, %arg6: memref<1x12x256xf32, #tpu.memory_space<vmem>>, %arg7: memref<4x512xf32, #tpu.memory_space<vmem>>, %arg8: memref<4x512xf32, #tpu.memory_space<vmem>>, %arg9: memref<4x512xf32, #tpu.memory_space<vmem>>) attributes {dimension_semantics = [#tpu.dimension_semantics<parallel>], iteration_bounds = array<i64: 2>, scalar_prefetch = 0 : i64, scratch_operands = 3 : i64, tpu.core_type = #tpu.core_type<tc>, window_params = [{transform_indices = @transform_0, window_bounds = array<i64: 1, 12, 256>}, {pipeline_mode = #tpu.pipeline_mode<synchronous>, transform_indices = @transform_1, window_bounds = array<i64: 4, 9>}, {pipeline_mode = #tpu.pipeline_mode<synchronous>, transform_indices = @transform_2, window_bounds = array<i64: 4, 11>}, {pipeline_mode = #tpu.pipeline_mode<synchronous>, transform_indices = @transform_3, window_bounds = array<i64: 4, 11>}, {pipeline_mode = #tpu.pipeline_mode<synchronous>, transform_indices = @transform_4, window_bounds = array<i64: 3, 4, 1>}, {transform_indices = @transform_5, window_bounds = array<i64: 1, 12, 256>}]} {
    %cst = arith.constant 0.000000e+00 : f32
    %0 = vector.broadcast %cst : f32 to vector<4x128xf32>
    %c0 = arith.constant 0 : index
    %c0_0 = arith.constant 0 : index
    %1 = vector.load %arg7[%c0, %c0_0] : memref<4x512xf32, #tpu.memory_space<vmem>>, vector<4x128xf32>
    tpu.vector_store %arg7[%c0, %c0_0], %0 {strides = array<i32>} : memref<4x512xf32, #tpu.memory_space<vmem>>, vector<4x128xf32>,
    %c0_1 = arith.constant 0 : index
    %c384 = arith.constant 384 : index
    %2 = vector.load %arg7[%c0_1, %c384] : memref<4x512xf32, #tpu.memory_space<vmem>>, vector<4x128xf32>
    tpu.vector_store %arg7[%c0_1, %c384], %0 {strides = array<i32>} : memref<4x512xf32, #tpu.memory_space<vmem>>, vector<4x128xf32>,
    %c0_2 = arith.constant 0 : index
    %c0_3 = arith.constant 0 : index
    %3 = vector.load %arg8[%c0_2, %c0_3] : memref<4x512xf32, #tpu.memory_space<vmem>>, vector<4x128xf32>
    tpu.vector_store %arg8[%c0_2, %c0_3], %0 {strides = array<i32>} : memref<4x512xf32, #tpu.memory_space<vmem>>, vector<4x128xf32>,
    %c0_4 = arith.constant 0 : index
    %c384_5 = arith.constant 384 : index
    %4 = vector.load %arg8[%c0_4, %c384_5] : memref<4x512xf32, #tpu.memory_space<vmem>>, vector<4x128xf32>
    tpu.vector_store %arg8[%c0_4, %c384_5], %0 {strides = array<i32>} : memref<4x512xf32, #tpu.memory_space<vmem>>, vector<4x128xf32>,
    %c0_6 = arith.constant 0 : index
    %c0_7 = arith.constant 0 : index
    %5 = vector.load %arg9[%c0_6, %c0_7] : memref<4x512xf32, #tpu.memory_space<vmem>>, vector<4x128xf32>
    tpu.vector_store %arg9[%c0_6, %c0_7], %0 {strides = array<i32>} : memref<4x512xf32, #tpu.memory_space<vmem>>, vector<4x128xf32>,
    %c0_8 = arith.constant 0 : index
    %c384_9 = arith.constant 384 : index
    %6 = vector.load %arg9[%c0_8, %c384_9] : memref<4x512xf32, #tpu.memory_space<vmem>>, vector<4x128xf32>
    tpu.vector_store %arg9[%c0_8, %c384_9], %0 {strides = array<i32>} : memref<4x512xf32, #tpu.memory_space<vmem>>, vector<4x128xf32>,
    %c0_10 = arith.constant 0 : index
    %c0_11 = arith.constant 0 : index
    %c0_12 = arith.constant 0 : index
    %7 = vector.load %arg1[%c0_10, %c0_11, %c0_12] : memref<1x12x256xf32, #tpu.memory_space<vmem>>, vector<1x4x256xf32>
    %8 = vector.shape_cast %7 : vector<1x4x256xf32> to vector<4x256xf32>
    %c0_13 = arith.constant 0 : index
    %c128 = arith.constant 128 : index
    %9 = vector.load %arg7[%c0_13, %c128] : memref<4x512xf32, #tpu.memory_space<vmem>>, vector<4x256xf32>
    tpu.vector_store %arg7[%c0_13, %c128], %8 {strides = array<i32>} : memref<4x512xf32, #tpu.memory_space<vmem>>, vector<4x256xf32>,
    %c0_14 = arith.constant 0 : index
    %c4 = arith.constant 4 : index
    %c0_15 = arith.constant 0 : index
    %10 = vector.load %arg1[%c0_14, %c4, %c0_15] : memref<1x12x256xf32, #tpu.memory_space<vmem>>, vector<1x4x256xf32>
    %11 = vector.shape_cast %10 : vector<1x4x256xf32> to vector<4x256xf32>
    %c0_16 = arith.constant 0 : index
    %c128_17 = arith.constant 128 : index
    %12 = vector.load %arg8[%c0_16, %c128_17] : memref<4x512xf32, #tpu.memory_space<vmem>>, vector<4x256xf32>
    tpu.vector_store %arg8[%c0_16, %c128_17], %11 {strides = array<i32>} : memref<4x512xf32, #tpu.memory_space<vmem>>, vector<4x256xf32>,
    %c0_18 = arith.constant 0 : index
    %c8 = arith.constant 8 : index
    %c0_19 = arith.constant 0 : index
    %13 = vector.load %arg1[%c0_18, %c8, %c0_19] : memref<1x12x256xf32, #tpu.memory_space<vmem>>, vector<1x4x256xf32>
    %14 = vector.shape_cast %13 : vector<1x4x256xf32> to vector<4x256xf32>
    %c0_20 = arith.constant 0 : index
    %c128_21 = arith.constant 128 : index
    %15 = vector.load %arg9[%c0_20, %c128_21] : memref<4x512xf32, #tpu.memory_space<vmem>>, vector<4x256xf32>
    tpu.vector_store %arg9[%c0_20, %c128_21], %14 {strides = array<i32>} : memref<4x512xf32, #tpu.memory_space<vmem>>, vector<4x256xf32>,
    %16 = tpu.iota {dimensions = array<i32: 1>} : vector<1x256xi32>
    %c15_i32 = arith.constant 15 : i32
    %17 = vector.broadcast %c15_i32 : i32 to vector<1x256xi32>
    %18 = arith.andi %16, %17 : vector<1x256xi32>
    %c-5_i32 = arith.constant -5 : i32
    %19 = vector.broadcast %c-5_i32 : i32 to vector<1x256xi32>
    %20 = arith.addi %18, %19 : vector<1x256xi32>
    %c0_i32 = arith.constant 0 : i32
    %21 = vector.broadcast %c0_i32 : i32 to vector<1x256xi32>
    %22 = arith.cmpi sge, %20, %21 : vector<1x256xi32>
    %c-5_i32_22 = arith.constant -5 : i32
    %23 = vector.broadcast %c-5_i32_22 : i32 to vector<1x256xi32>
    %24 = arith.addi %18, %23 : vector<1x256xi32>
    %c16_i32 = arith.constant 16 : i32
    %25 = vector.broadcast %c16_i32 : i32 to vector<1x256xi32>
    %26 = arith.cmpi slt, %24, %25 : vector<1x256xi32>
    %27 = arith.andi %22, %26 : vector<1x256xi1>
    %c-4_i32 = arith.constant -4 : i32
    %28 = vector.broadcast %c-4_i32 : i32 to vector<1x256xi32>
    %29 = arith.addi %18, %28 : vector<1x256xi32>
    %c0_i32_23 = arith.constant 0 : i32
    %30 = vector.broadcast %c0_i32_23 : i32 to vector<1x256xi32>
    %31 = arith.cmpi sge, %29, %30 : vector<1x256xi32>
    %c-4_i32_24 = arith.constant -4 : i32
    %32 = vector.broadcast %c-4_i32_24 : i32 to vector<1x256xi32>
    %33 = arith.addi %18, %32 : vector<1x256xi32>
    %c16_i32_25 = arith.constant 16 : i32
    %34 = vector.broadcast %c16_i32_25 : i32 to vector<1x256xi32>
    %35 = arith.cmpi slt, %33, %34 : vector<1x256xi32>
    %36 = arith.andi %31, %35 : vector<1x256xi1>
    %c-3_i32 = arith.constant -3 : i32
    %37 = vector.broadcast %c-3_i32 : i32 to vector<1x256xi32>
    %38 = arith.addi %18, %37 : vector<1x256xi32>
    %c0_i32_26 = arith.constant 0 : i32
    %39 = vector.broadcast %c0_i32_26 : i32 to vector<1x256xi32>
    %40 = arith.cmpi sge, %38, %39 : vector<1x256xi32>
    %c-3_i32_27 = arith.constant -3 : i32
    %41 = vector.broadcast %c-3_i32_27 : i32 to vector<1x256xi32>
    %42 = arith.addi %18, %41 : vector<1x256xi32>
    %c16_i32_28 = arith.constant 16 : i32
    %43 = vector.broadcast %c16_i32_28 : i32 to vector<1x256xi32>
    %44 = arith.cmpi slt, %42, %43 : vector<1x256xi32>
    %45 = arith.andi %40, %44 : vector<1x256xi1>
    %c-2_i32 = arith.constant -2 : i32
    %46 = vector.broadcast %c-2_i32 : i32 to vector<1x256xi32>
    %47 = arith.addi %18, %46 : vector<1x256xi32>
    %c0_i32_29 = arith.constant 0 : i32
    %48 = vector.broadcast %c0_i32_29 : i32 to vector<1x256xi32>
    %49 = arith.cmpi sge, %47, %48 : vector<1x256xi32>
    %c-2_i32_30 = arith.constant -2 : i32
    %50 = vector.broadcast %c-2_i32_30 : i32 to vector<1x256xi32>
    %51 = arith.addi %18, %50 : vector<1x256xi32>
    %c16_i32_31 = arith.constant 16 : i32
    %52 = vector.broadcast %c16_i32_31 : i32 to vector<1x256xi32>
    %53 = arith.cmpi slt, %51, %52 : vector<1x256xi32>
    %54 = arith.andi %49, %53 : vector<1x256xi1>
    %c-1_i32 = arith.constant -1 : i32
    %55 = vector.broadcast %c-1_i32 : i32 to vector<1x256xi32>
    %56 = arith.addi %18, %55 : vector<1x256xi32>
    %c0_i32_32 = arith.constant 0 : i32
    %57 = vector.broadcast %c0_i32_32 : i32 to vector<1x256xi32>
    %58 = arith.cmpi sge, %56, %57 : vector<1x256xi32>
    %c-1_i32_33 = arith.constant -1 : i32
    %59 = vector.broadcast %c-1_i32_33 : i32 to vector<1x256xi32>
    %60 = arith.addi %18, %59 : vector<1x256xi32>
    %c16_i32_34 = arith.constant 16 : i32
    %61 = vector.broadcast %c16_i32_34 : i32 to vector<1x256xi32>
    %62 = arith.cmpi slt, %60, %61 : vector<1x256xi32>
    %63 = arith.andi %58, %62 : vector<1x256xi1>
    %c1_i32 = arith.constant 1 : i32
    %64 = vector.broadcast %c1_i32 : i32 to vector<1x256xi32>
    %65 = arith.addi %18, %64 : vector<1x256xi32>
    %c0_i32_35 = arith.constant 0 : i32
    %66 = vector.broadcast %c0_i32_35 : i32 to vector<1x256xi32>
    %67 = arith.cmpi sge, %65, %66 : vector<1x256xi32>
    %c1_i32_36 = arith.constant 1 : i32
    %68 = vector.broadcast %c1_i32_36 : i32 to vector<1x256xi32>
    %69 = arith.addi %18, %68 : vector<1x256xi32>
    %c16_i32_37 = arith.constant 16 : i32
    %70 = vector.broadcast %c16_i32_37 : i32 to vector<1x256xi32>
    %71 = arith.cmpi slt, %69, %70 : vector<1x256xi32>
    %72 = arith.andi %67, %71 : vector<1x256xi1>
    %c2_i32 = arith.constant 2 : i32
    %73 = vector.broadcast %c2_i32 : i32 to vector<1x256xi32>
    %74 = arith.addi %18, %73 : vector<1x256xi32>
    %c0_i32_38 = arith.constant 0 : i32
    %75 = vector.broadcast %c0_i32_38 : i32 to vector<1x256xi32>
    %76 = arith.cmpi sge, %74, %75 : vector<1x256xi32>
    %c2_i32_39 = arith.constant 2 : i32
    %77 = vector.broadcast %c2_i32_39 : i32 to vector<1x256xi32>
    %78 = arith.addi %18, %77 : vector<1x256xi32>
    %c16_i32_40 = arith.constant 16 : i32
    %79 = vector.broadcast %c16_i32_40 : i32 to vector<1x256xi32>
    %80 = arith.cmpi slt, %78, %79 : vector<1x256xi32>
    %81 = arith.andi %76, %80 : vector<1x256xi1>
    %c3_i32 = arith.constant 3 : i32
    %82 = vector.broadcast %c3_i32 : i32 to vector<1x256xi32>
    %83 = arith.addi %18, %82 : vector<1x256xi32>
    %c0_i32_41 = arith.constant 0 : i32
    %84 = vector.broadcast %c0_i32_41 : i32 to vector<1x256xi32>
    %85 = arith.cmpi sge, %83, %84 : vector<1x256xi32>
    %c3_i32_42 = arith.constant 3 : i32
    %86 = vector.broadcast %c3_i32_42 : i32 to vector<1x256xi32>
    %87 = arith.addi %18, %86 : vector<1x256xi32>
    %c16_i32_43 = arith.constant 16 : i32
    %88 = vector.broadcast %c16_i32_43 : i32 to vector<1x256xi32>
    %89 = arith.cmpi slt, %87, %88 : vector<1x256xi32>
    %90 = arith.andi %85, %89 : vector<1x256xi1>
    %c4_i32 = arith.constant 4 : i32
    %91 = vector.broadcast %c4_i32 : i32 to vector<1x256xi32>
    %92 = arith.addi %18, %91 : vector<1x256xi32>
    %c0_i32_44 = arith.constant 0 : i32
    %93 = vector.broadcast %c0_i32_44 : i32 to vector<1x256xi32>
    %94 = arith.cmpi sge, %92, %93 : vector<1x256xi32>
    %c4_i32_45 = arith.constant 4 : i32
    %95 = vector.broadcast %c4_i32_45 : i32 to vector<1x256xi32>
    %96 = arith.addi %18, %95 : vector<1x256xi32>
    %c16_i32_46 = arith.constant 16 : i32
    %97 = vector.broadcast %c16_i32_46 : i32 to vector<1x256xi32>
    %98 = arith.cmpi slt, %96, %97 : vector<1x256xi32>
    %99 = arith.andi %94, %98 : vector<1x256xi1>
    %c5_i32 = arith.constant 5 : i32
    %100 = vector.broadcast %c5_i32 : i32 to vector<1x256xi32>
    %101 = arith.addi %18, %100 : vector<1x256xi32>
    %c0_i32_47 = arith.constant 0 : i32
    %102 = vector.broadcast %c0_i32_47 : i32 to vector<1x256xi32>
    %103 = arith.cmpi sge, %101, %102 : vector<1x256xi32>
    %c5_i32_48 = arith.constant 5 : i32
    %104 = vector.broadcast %c5_i32_48 : i32 to vector<1x256xi32>
    %105 = arith.addi %18, %104 : vector<1x256xi32>
    %c16_i32_49 = arith.constant 16 : i32
    %106 = vector.broadcast %c16_i32_49 : i32 to vector<1x256xi32>
    %107 = arith.cmpi slt, %105, %106 : vector<1x256xi32>
    %108 = arith.andi %103, %107 : vector<1x256xi1>
    %cst_50 = arith.constant 0.000000e+00 : f32
    %109 = vector.broadcast %cst_50 : f32 to vector<4x256xf32>
    %c0_51 = arith.constant 0 : index
    %c0_52 = arith.constant 0 : index
    %c0_53 = arith.constant 0 : index
    %110 = vector.load %arg5[%c0_51, %c0_52, %c0_53] : memref<3x4x1xf32, #tpu.memory_space<vmem>>, vector<1x4x1xf32>
    %111 = vector.shape_cast %110 : vector<1x4x1xf32> to vector<4x1xf32>
    %112 = vector.broadcast %111 : vector<4x1xf32> to vector<4x256xf32>
    %113 = arith.addf %109, %112 : vector<4x256xf32>
    %c0_54 = arith.constant 0 : index
    %c111 = arith.constant 111 : index
    %114 = vector.load %arg7[%c0_54, %c111] : memref<4x512xf32, #tpu.memory_space<vmem>>, vector<4x256xf32>
    %cst_55 = arith.constant 0.000000e+00 : f32
    %115 = vector.shape_cast %63 : vector<1x256xi1> to vector<1x256xi1>
    %116 = vector.broadcast %115 : vector<1x256xi1> to vector<4x256xi1>
    %117 = vector.broadcast %cst_55 : f32 to vector<4x256xf32>
    %118 = arith.select %116, %114, %117 : vector<4x256xi1>, vector<4x256xf32>
    %c0_56 = arith.constant 0 : index
    %c0_57 = arith.constant 0 : index
    %119 = vector.load %arg2[%c0_56, %c0_57] : memref<4x9xf32, #tpu.memory_space<vmem>>, vector<4x1xf32>
    %120 = vector.broadcast %119 : vector<4x1xf32> to vector<4x256xf32>
    %121 = arith.mulf %120, %118 : vector<4x256xf32>
    %122 = arith.addf %113, %121 : vector<4x256xf32>
    %c0_58 = arith.constant 0 : index
    %c112 = arith.constant 112 : index
    %123 = vector.load %arg7[%c0_58, %c112] : memref<4x512xf32, #tpu.memory_space<vmem>>, vector<4x256xf32>
    %c0_59 = arith.constant 0 : index
    %c1 = arith.constant 1 : index
    %124 = vector.load %arg2[%c0_59, %c1] : memref<4x9xf32, #tpu.memory_space<vmem>>, vector<4x1xf32>
    %125 = vector.broadcast %124 : vector<4x1xf32> to vector<4x256xf32>
    %126 = arith.mulf %125, %123 : vector<4x256xf32>
    %127 = arith.addf %122, %126 : vector<4x256xf32>
    %c0_60 = arith.constant 0 : index
    %c113 = arith.constant 113 : index
    %128 = vector.load %arg7[%c0_60, %c113] : memref<4x512xf32, #tpu.memory_space<vmem>>, vector<4x256xf32>
    %cst_61 = arith.constant 0.000000e+00 : f32
    %129 = vector.shape_cast %72 : vector<1x256xi1> to vector<1x256xi1>
    %130 = vector.broadcast %129 : vector<1x256xi1> to vector<4x256xi1>
    %131 = vector.broadcast %cst_61 : f32 to vector<4x256xf32>
    %132 = arith.select %130, %128, %131 : vector<4x256xi1>, vector<4x256xf32>
    %c0_62 = arith.constant 0 : index
    %c2 = arith.constant 2 : index
    %133 = vector.load %arg2[%c0_62, %c2] : memref<4x9xf32, #tpu.memory_space<vmem>>, vector<4x1xf32>
    %134 = vector.broadcast %133 : vector<4x1xf32> to vector<4x256xf32>
    %135 = arith.mulf %134, %132 : vector<4x256xf32>
    %136 = arith.addf %127, %135 : vector<4x256xf32>
    %c0_63 = arith.constant 0 : index
    %c127 = arith.constant 127 : index
    %137 = vector.load %arg7[%c0_63, %c127] : memref<4x512xf32, #tpu.memory_space<vmem>>, vector<4x256xf32>
    %cst_64 = arith.constant 0.000000e+00 : f32
    %138 = vector.shape_cast %63 : vector<1x256xi1> to vector<1x256xi1>
    %139 = vector.broadcast %138 : vector<1x256xi1> to vector<4x256xi1>
    %140 = vector.broadcast %cst_64 : f32 to vector<4x256xf32>
    %141 = arith.select %139, %137, %140 : vector<4x256xi1>, vector<4x256xf32>
    %c0_65 = arith.constant 0 : index
    %c3 = arith.constant 3 : index
    %142 = vector.load %arg2[%c0_65, %c3] : memref<4x9xf32, #tpu.memory_space<vmem>>, vector<4x1xf32>
    %143 = vector.broadcast %142 : vector<4x1xf32> to vector<4x256xf32>
    %144 = arith.mulf %143, %141 : vector<4x256xf32>
    %145 = arith.addf %136, %144 : vector<4x256xf32>
    %c0_66 = arith.constant 0 : index
    %c128_67 = arith.constant 128 : index
    %146 = vector.load %arg7[%c0_66, %c128_67] : memref<4x512xf32, #tpu.memory_space<vmem>>, vector<4x256xf32>
    %c0_68 = arith.constant 0 : index
    %c4_69 = arith.constant 4 : index
    %147 = vector.load %arg2[%c0_68, %c4_69] : memref<4x9xf32, #tpu.memory_space<vmem>>, vector<4x1xf32>
    %148 = vector.broadcast %147 : vector<4x1xf32> to vector<4x256xf32>
    %149 = arith.mulf %148, %146 : vector<4x256xf32>
    %150 = arith.addf %145, %149 : vector<4x256xf32>
    %c0_70 = arith.constant 0 : index
    %c129 = arith.constant 129 : index
    %151 = vector.load %arg7[%c0_70, %c129] : memref<4x512xf32, #tpu.memory_space<vmem>>, vector<4x256xf32>
    %cst_71 = arith.constant 0.000000e+00 : f32
    %152 = vector.shape_cast %72 : vector<1x256xi1> to vector<1x256xi1>
    %153 = vector.broadcast %152 : vector<1x256xi1> to vector<4x256xi1>
    %154 = vector.broadcast %cst_71 : f32 to vector<4x256xf32>
    %155 = arith.select %153, %151, %154 : vector<4x256xi1>, vector<4x256xf32>
    %c0_72 = arith.constant 0 : index
    %c5 = arith.constant 5 : index
    %156 = vector.load %arg2[%c0_72, %c5] : memref<4x9xf32, #tpu.memory_space<vmem>>, vector<4x1xf32>
    %157 = vector.broadcast %156 : vector<4x1xf32> to vector<4x256xf32>
    %158 = arith.mulf %157, %155 : vector<4x256xf32>
    %159 = arith.addf %150, %158 : vector<4x256xf32>
    %c0_73 = arith.constant 0 : index
    %c143 = arith.constant 143 : index
    %160 = vector.load %arg7[%c0_73, %c143] : memref<4x512xf32, #tpu.memory_space<vmem>>, vector<4x256xf32>
    %cst_74 = arith.constant 0.000000e+00 : f32
    %161 = vector.shape_cast %63 : vector<1x256xi1> to vector<1x256xi1>
    %162 = vector.broadcast %161 : vector<1x256xi1> to vector<4x256xi1>
    %163 = vector.broadcast %cst_74 : f32 to vector<4x256xf32>
    %164 = arith.select %162, %160, %163 : vector<4x256xi1>, vector<4x256xf32>
    %c0_75 = arith.constant 0 : index
    %c6 = arith.constant 6 : index
    %165 = vector.load %arg2[%c0_75, %c6] : memref<4x9xf32, #tpu.memory_space<vmem>>, vector<4x1xf32>
    %166 = vector.broadcast %165 : vector<4x1xf32> to vector<4x256xf32>
    %167 = arith.mulf %166, %164 : vector<4x256xf32>
    %168 = arith.addf %159, %167 : vector<4x256xf32>
    %c0_76 = arith.constant 0 : index
    %c144 = arith.constant 144 : index
    %169 = vector.load %arg7[%c0_76, %c144] : memref<4x512xf32, #tpu.memory_space<vmem>>, vector<4x256xf32>
    %c0_77 = arith.constant 0 : index
    %c7 = arith.constant 7 : index
    %170 = vector.load %arg2[%c0_77, %c7] : memref<4x9xf32, #tpu.memory_space<vmem>>, vector<4x1xf32>
    %171 = vector.broadcast %170 : vector<4x1xf32> to vector<4x256xf32>
    %172 = arith.mulf %171, %169 : vector<4x256xf32>
    %173 = arith.addf %168, %172 : vector<4x256xf32>
    %c0_78 = arith.constant 0 : index
    %c145 = arith.constant 145 : index
    %174 = vector.load %arg7[%c0_78, %c145] : memref<4x512xf32, #tpu.memory_space<vmem>>, vector<4x256xf32>
    %cst_79 = arith.constant 0.000000e+00 : f32
    %175 = vector.shape_cast %72 : vector<1x256xi1> to vector<1x256xi1>
    %176 = vector.broadcast %175 : vector<1x256xi1> to vector<4x256xi1>
    %177 = vector.broadcast %cst_79 : f32 to vector<4x256xf32>
    %178 = arith.select %176, %174, %177 : vector<4x256xi1>, vector<4x256xf32>
    %c0_80 = arith.constant 0 : index
    %c8_81 = arith.constant 8 : index
    %179 = vector.load %arg2[%c0_80, %c8_81] : memref<4x9xf32, #tpu.memory_space<vmem>>, vector<4x1xf32>
    %180 = vector.broadcast %179 : vector<4x1xf32> to vector<4x256xf32>
    %181 = arith.mulf %180, %178 : vector<4x256xf32>
    %182 = arith.addf %173, %181 : vector<4x256xf32>
    %c0_82 = arith.constant 0 : index
    %c0_83 = arith.constant 0 : index
    %c0_84 = arith.constant 0 : index
    %183 = vector.load %arg6[%c0_82, %c0_83, %c0_84] : memref<1x12x256xf32, #tpu.memory_space<vmem>>, vector<1x4x256xf32>
    %184 = vector.shape_cast %183 : vector<1x4x256xf32> to vector<4x256xf32>
    %185 = vector.shape_cast %182 : vector<4x256xf32> to vector<1x4x256xf32>
    tpu.vector_store %arg6[%c0_82, %c0_83, %c0_84], %185 {strides = array<i32>} : memref<1x12x256xf32, #tpu.memory_space<vmem>>, vector<1x4x256xf32>,
    %cst_85 = arith.constant 0.000000e+00 : f32
    %186 = vector.broadcast %cst_85 : f32 to vector<4x256xf32>
    %c1_86 = arith.constant 1 : index
    %c0_87 = arith.constant 0 : index
    %c0_88 = arith.constant 0 : index
    %187 = vector.load %arg5[%c1_86, %c0_87, %c0_88] : memref<3x4x1xf32, #tpu.memory_space<vmem>>, vector<1x4x1xf32>
    %188 = vector.shape_cast %187 : vector<1x4x1xf32> to vector<4x1xf32>
    %189 = vector.broadcast %188 : vector<4x1xf32> to vector<4x256xf32>
    %190 = arith.addf %186, %189 : vector<4x256xf32>
    %c0_89 = arith.constant 0 : index
    %c123 = arith.constant 123 : index
    %191 = vector.load %arg8[%c0_89, %c123] : memref<4x512xf32, #tpu.memory_space<vmem>>, vector<4x256xf32>
    %cst_90 = arith.constant 0.000000e+00 : f32
    %192 = vector.shape_cast %27 : vector<1x256xi1> to vector<1x256xi1>
    %193 = vector.broadcast %192 : vector<1x256xi1> to vector<4x256xi1>
    %194 = vector.broadcast %cst_90 : f32 to vector<4x256xf32>
    %195 = arith.select %193, %191, %194 : vector<4x256xi1>, vector<4x256xf32>
    %c0_91 = arith.constant 0 : index
    %c0_92 = arith.constant 0 : index
    %196 = vector.load %arg3[%c0_91, %c0_92] : memref<4x11xf32, #tpu.memory_space<vmem>>, vector<4x1xf32>
    %197 = vector.broadcast %196 : vector<4x1xf32> to vector<4x256xf32>
    %198 = arith.mulf %197, %195 : vector<4x256xf32>
    %199 = arith.addf %190, %198 : vector<4x256xf32>
    %c0_93 = arith.constant 0 : index
    %c124 = arith.constant 124 : index
    %200 = vector.load %arg8[%c0_93, %c124] : memref<4x512xf32, #tpu.memory_space<vmem>>, vector<4x256xf32>
    %cst_94 = arith.constant 0.000000e+00 : f32
    %201 = vector.shape_cast %36 : vector<1x256xi1> to vector<1x256xi1>
    %202 = vector.broadcast %201 : vector<1x256xi1> to vector<4x256xi1>
    %203 = vector.broadcast %cst_94 : f32 to vector<4x256xf32>
    %204 = arith.select %202, %200, %203 : vector<4x256xi1>, vector<4x256xf32>
    %c0_95 = arith.constant 0 : index
    %c1_96 = arith.constant 1 : index
    %205 = vector.load %arg3[%c0_95, %c1_96] : memref<4x11xf32, #tpu.memory_space<vmem>>, vector<4x1xf32>
    %206 = vector.broadcast %205 : vector<4x1xf32> to vector<4x256xf32>
    %207 = arith.mulf %206, %204 : vector<4x256xf32>
    %208 = arith.addf %199, %207 : vector<4x256xf32>
    %c0_97 = arith.constant 0 : index
    %c125 = arith.constant 125 : index
    %209 = vector.load %arg8[%c0_97, %c125] : memref<4x512xf32, #tpu.memory_space<vmem>>, vector<4x256xf32>
    %cst_98 = arith.constant 0.000000e+00 : f32
    %210 = vector.shape_cast %45 : vector<1x256xi1> to vector<1x256xi1>
    %211 = vector.broadcast %210 : vector<1x256xi1> to vector<4x256xi1>
    %212 = vector.broadcast %cst_98 : f32 to vector<4x256xf32>
    %213 = arith.select %211, %209, %212 : vector<4x256xi1>, vector<4x256xf32>
    %c0_99 = arith.constant 0 : index
    %c2_100 = arith.constant 2 : index
    %214 = vector.load %arg3[%c0_99, %c2_100] : memref<4x11xf32, #tpu.memory_space<vmem>>, vector<4x1xf32>
    %215 = vector.broadcast %214 : vector<4x1xf32> to vector<4x256xf32>
    %216 = arith.mulf %215, %213 : vector<4x256xf32>
    %217 = arith.addf %208, %216 : vector<4x256xf32>
    %c0_101 = arith.constant 0 : index
    %c126 = arith.constant 126 : index
    %218 = vector.load %arg8[%c0_101, %c126] : memref<4x512xf32, #tpu.memory_space<vmem>>, vector<4x256xf32>
    %cst_102 = arith.constant 0.000000e+00 : f32
    %219 = vector.shape_cast %54 : vector<1x256xi1> to vector<1x256xi1>
    %220 = vector.broadcast %219 : vector<1x256xi1> to vector<4x256xi1>
    %221 = vector.broadcast %cst_102 : f32 to vector<4x256xf32>
    %222 = arith.select %220, %218, %221 : vector<4x256xi1>, vector<4x256xf32>
    %c0_103 = arith.constant 0 : index
    %c3_104 = arith.constant 3 : index
    %223 = vector.load %arg3[%c0_103, %c3_104] : memref<4x11xf32, #tpu.memory_space<vmem>>, vector<4x1xf32>
    %224 = vector.broadcast %223 : vector<4x1xf32> to vector<4x256xf32>
    %225 = arith.mulf %224, %222 : vector<4x256xf32>
    %226 = arith.addf %217, %225 : vector<4x256xf32>
    %c0_105 = arith.constant 0 : index
    %c127_106 = arith.constant 127 : index
    %227 = vector.load %arg8[%c0_105, %c127_106] : memref<4x512xf32, #tpu.memory_space<vmem>>, vector<4x256xf32>
    %cst_107 = arith.constant 0.000000e+00 : f32
    %228 = vector.shape_cast %63 : vector<1x256xi1> to vector<1x256xi1>
    %229 = vector.broadcast %228 : vector<1x256xi1> to vector<4x256xi1>
    %230 = vector.broadcast %cst_107 : f32 to vector<4x256xf32>
    %231 = arith.select %229, %227, %230 : vector<4x256xi1>, vector<4x256xf32>
    %c0_108 = arith.constant 0 : index
    %c4_109 = arith.constant 4 : index
    %232 = vector.load %arg3[%c0_108, %c4_109] : memref<4x11xf32, #tpu.memory_space<vmem>>, vector<4x1xf32>
    %233 = vector.broadcast %232 : vector<4x1xf32> to vector<4x256xf32>
    %234 = arith.mulf %233, %231 : vector<4x256xf32>
    %235 = arith.addf %226, %234 : vector<4x256xf32>
    %c0_110 = arith.constant 0 : index
    %c128_111 = arith.constant 128 : index
    %236 = vector.load %arg8[%c0_110, %c128_111] : memref<4x512xf32, #tpu.memory_space<vmem>>, vector<4x256xf32>
    %c0_112 = arith.constant 0 : index
    %c5_113 = arith.constant 5 : index
    %237 = vector.load %arg3[%c0_112, %c5_113] : memref<4x11xf32, #tpu.memory_space<vmem>>, vector<4x1xf32>
    %238 = vector.broadcast %237 : vector<4x1xf32> to vector<4x256xf32>
    %239 = arith.mulf %238, %236 : vector<4x256xf32>
    %240 = arith.addf %235, %239 : vector<4x256xf32>
    %c0_114 = arith.constant 0 : index
    %c129_115 = arith.constant 129 : index
    %241 = vector.load %arg8[%c0_114, %c129_115] : memref<4x512xf32, #tpu.memory_space<vmem>>, vector<4x256xf32>
    %cst_116 = arith.constant 0.000000e+00 : f32
    %242 = vector.shape_cast %72 : vector<1x256xi1> to vector<1x256xi1>
    %243 = vector.broadcast %242 : vector<1x256xi1> to vector<4x256xi1>
    %244 = vector.broadcast %cst_116 : f32 to vector<4x256xf32>
    %245 = arith.select %243, %241, %244 : vector<4x256xi1>, vector<4x256xf32>
    %c0_117 = arith.constant 0 : index
    %c6_118 = arith.constant 6 : index
    %246 = vector.load %arg3[%c0_117, %c6_118] : memref<4x11xf32, #tpu.memory_space<vmem>>, vector<4x1xf32>
    %247 = vector.broadcast %246 : vector<4x1xf32> to vector<4x256xf32>
    %248 = arith.mulf %247, %245 : vector<4x256xf32>
    %249 = arith.addf %240, %248 : vector<4x256xf32>
    %c0_119 = arith.constant 0 : index
    %c130 = arith.constant 130 : index
    %250 = vector.load %arg8[%c0_119, %c130] : memref<4x512xf32, #tpu.memory_space<vmem>>, vector<4x256xf32>
    %cst_120 = arith.constant 0.000000e+00 : f32
    %251 = vector.shape_cast %81 : vector<1x256xi1> to vector<1x256xi1>
    %252 = vector.broadcast %251 : vector<1x256xi1> to vector<4x256xi1>
    %253 = vector.broadcast %cst_120 : f32 to vector<4x256xf32>
    %254 = arith.select %252, %250, %253 : vector<4x256xi1>, vector<4x256xf32>
    %c0_121 = arith.constant 0 : index
    %c7_122 = arith.constant 7 : index
    %255 = vector.load %arg3[%c0_121, %c7_122] : memref<4x11xf32, #tpu.memory_space<vmem>>, vector<4x1xf32>
    %256 = vector.broadcast %255 : vector<4x1xf32> to vector<4x256xf32>
    %257 = arith.mulf %256, %254 : vector<4x256xf32>
    %258 = arith.addf %249, %257 : vector<4x256xf32>
    %c0_123 = arith.constant 0 : index
    %c131 = arith.constant 131 : index
    %259 = vector.load %arg8[%c0_123, %c131] : memref<4x512xf32, #tpu.memory_space<vmem>>, vector<4x256xf32>
    %cst_124 = arith.constant 0.000000e+00 : f32
    %260 = vector.shape_cast %90 : vector<1x256xi1> to vector<1x256xi1>
    %261 = vector.broadcast %260 : vector<1x256xi1> to vector<4x256xi1>
    %262 = vector.broadcast %cst_124 : f32 to vector<4x256xf32>
    %263 = arith.select %261, %259, %262 : vector<4x256xi1>, vector<4x256xf32>
    %c0_125 = arith.constant 0 : index
    %c8_126 = arith.constant 8 : index
    %264 = vector.load %arg3[%c0_125, %c8_126] : memref<4x11xf32, #tpu.memory_space<vmem>>, vector<4x1xf32>
    %265 = vector.broadcast %264 : vector<4x1xf32> to vector<4x256xf32>
    %266 = arith.mulf %265, %263 : vector<4x256xf32>
    %267 = arith.addf %258, %266 : vector<4x256xf32>
    %c0_127 = arith.constant 0 : index
    %c132 = arith.constant 132 : index
    %268 = vector.load %arg8[%c0_127, %c132] : memref<4x512xf32, #tpu.memory_space<vmem>>, vector<4x256xf32>
    %cst_128 = arith.constant 0.000000e+00 : f32
    %269 = vector.shape_cast %99 : vector<1x256xi1> to vector<1x256xi1>
    %270 = vector.broadcast %269 : vector<1x256xi1> to vector<4x256xi1>
    %271 = vector.broadcast %cst_128 : f32 to vector<4x256xf32>
    %272 = arith.select %270, %268, %271 : vector<4x256xi1>, vector<4x256xf32>
    %c0_129 = arith.constant 0 : index
    %c9 = arith.constant 9 : index
    %273 = vector.load %arg3[%c0_129, %c9] : memref<4x11xf32, #tpu.memory_space<vmem>>, vector<4x1xf32>
    %274 = vector.broadcast %273 : vector<4x1xf32> to vector<4x256xf32>
    %275 = arith.mulf %274, %272 : vector<4x256xf32>
    %276 = arith.addf %267, %275 : vector<4x256xf32>
    %c0_130 = arith.constant 0 : index
    %c133 = arith.constant 133 : index
    %277 = vector.load %arg8[%c0_130, %c133] : memref<4x512xf32, #tpu.memory_space<vmem>>, vector<4x256xf32>
    %cst_131 = arith.constant 0.000000e+00 : f32
    %278 = vector.shape_cast %108 : vector<1x256xi1> to vector<1x256xi1>
    %279 = vector.broadcast %278 : vector<1x256xi1> to vector<4x256xi1>
    %280 = vector.broadcast %cst_131 : f32 to vector<4x256xf32>
    %281 = arith.select %279, %277, %280 : vector<4x256xi1>, vector<4x256xf32>
    %c0_132 = arith.constant 0 : index
    %c10 = arith.constant 10 : index
    %282 = vector.load %arg3[%c0_132, %c10] : memref<4x11xf32, #tpu.memory_space<vmem>>, vector<4x1xf32>
    %283 = vector.broadcast %282 : vector<4x1xf32> to vector<4x256xf32>
    %284 = arith.mulf %283, %281 : vector<4x256xf32>
    %285 = arith.addf %276, %284 : vector<4x256xf32>
    %c0_133 = arith.constant 0 : index
    %c4_134 = arith.constant 4 : index
    %c0_135 = arith.constant 0 : index
    %286 = vector.load %arg6[%c0_133, %c4_134, %c0_135] : memref<1x12x256xf32, #tpu.memory_space<vmem>>, vector<1x4x256xf32>
    %287 = vector.shape_cast %286 : vector<1x4x256xf32> to vector<4x256xf32>
    %288 = vector.shape_cast %285 : vector<4x256xf32> to vector<1x4x256xf32>
    tpu.vector_store %arg6[%c0_133, %c4_134, %c0_135], %288 {strides = array<i32>} : memref<1x12x256xf32, #tpu.memory_space<vmem>>, vector<1x4x256xf32>,
    %cst_136 = arith.constant 0.000000e+00 : f32
    %289 = vector.broadcast %cst_136 : f32 to vector<4x256xf32>
    %c2_137 = arith.constant 2 : index
    %c0_138 = arith.constant 0 : index
    %c0_139 = arith.constant 0 : index
    %290 = vector.load %arg5[%c2_137, %c0_138, %c0_139] : memref<3x4x1xf32, #tpu.memory_space<vmem>>, vector<1x4x1xf32>
    %291 = vector.shape_cast %290 : vector<1x4x1xf32> to vector<4x1xf32>
    %292 = vector.broadcast %291 : vector<4x1xf32> to vector<4x256xf32>
    %293 = arith.addf %289, %292 : vector<4x256xf32>
    %c0_140 = arith.constant 0 : index
    %c48 = arith.constant 48 : index
    %294 = vector.load %arg9[%c0_140, %c48] : memref<4x512xf32, #tpu.memory_space<vmem>>, vector<4x256xf32>
    %c0_141 = arith.constant 0 : index
    %c0_142 = arith.constant 0 : index
    %295 = vector.load %arg4[%c0_141, %c0_142] : memref<4x11xf32, #tpu.memory_space<vmem>>, vector<4x1xf32>
    %296 = vector.broadcast %295 : vector<4x1xf32> to vector<4x256xf32>
    %297 = arith.mulf %296, %294 : vector<4x256xf32>
    %298 = arith.addf %293, %297 : vector<4x256xf32>
    %c0_143 = arith.constant 0 : index
    %c64 = arith.constant 64 : index
    %299 = vector.load %arg9[%c0_143, %c64] : memref<4x512xf32, #tpu.memory_space<vmem>>, vector<4x256xf32>
    %c0_144 = arith.constant 0 : index
    %c1_145 = arith.constant 1 : index
    %300 = vector.load %arg4[%c0_144, %c1_145] : memref<4x11xf32, #tpu.memory_space<vmem>>, vector<4x1xf32>
    %301 = vector.broadcast %300 : vector<4x1xf32> to vector<4x256xf32>
    %302 = arith.mulf %301, %299 : vector<4x256xf32>
    %303 = arith.addf %298, %302 : vector<4x256xf32>
    %c0_146 = arith.constant 0 : index
    %c80 = arith.constant 80 : index
    %304 = vector.load %arg9[%c0_146, %c80] : memref<4x512xf32, #tpu.memory_space<vmem>>, vector<4x256xf32>
    %c0_147 = arith.constant 0 : index
    %c2_148 = arith.constant 2 : index
    %305 = vector.load %arg4[%c0_147, %c2_148] : memref<4x11xf32, #tpu.memory_space<vmem>>, vector<4x1xf32>
    %306 = vector.broadcast %305 : vector<4x1xf32> to vector<4x256xf32>
    %307 = arith.mulf %306, %304 : vector<4x256xf32>
    %308 = arith.addf %303, %307 : vector<4x256xf32>
    %c0_149 = arith.constant 0 : index
    %c96 = arith.constant 96 : index
    %309 = vector.load %arg9[%c0_149, %c96] : memref<4x512xf32, #tpu.memory_space<vmem>>, vector<4x256xf32>
    %c0_150 = arith.constant 0 : index
    %c3_151 = arith.constant 3 : index
    %310 = vector.load %arg4[%c0_150, %c3_151] : memref<4x11xf32, #tpu.memory_space<vmem>>, vector<4x1xf32>
    %311 = vector.broadcast %310 : vector<4x1xf32> to vector<4x256xf32>
    %312 = arith.mulf %311, %309 : vector<4x256xf32>
    %313 = arith.addf %308, %312 : vector<4x256xf32>
    %c0_152 = arith.constant 0 : index
    %c112_153 = arith.constant 112 : index
    %314 = vector.load %arg9[%c0_152, %c112_153] : memref<4x512xf32, #tpu.memory_space<vmem>>, vector<4x256xf32>
    %c0_154 = arith.constant 0 : index
    %c4_155 = arith.constant 4 : index
    %315 = vector.load %arg4[%c0_154, %c4_155] : memref<4x11xf32, #tpu.memory_space<vmem>>, vector<4x1xf32>
    %316 = vector.broadcast %315 : vector<4x1xf32> to vector<4x256xf32>
    %317 = arith.mulf %316, %314 : vector<4x256xf32>
    %318 = arith.addf %313, %317 : vector<4x256xf32>
    %c0_156 = arith.constant 0 : index
    %c128_157 = arith.constant 128 : index
    %319 = vector.load %arg9[%c0_156, %c128_157] : memref<4x512xf32, #tpu.memory_space<vmem>>, vector<4x256xf32>
    %c0_158 = arith.constant 0 : index
    %c5_159 = arith.constant 5 : index
    %320 = vector.load %arg4[%c0_158, %c5_159] : memref<4x11xf32, #tpu.memory_space<vmem>>, vector<4x1xf32>
    %321 = vector.broadcast %320 : vector<4x1xf32> to vector<4x256xf32>
    %322 = arith.mulf %321, %319 : vector<4x256xf32>
    %323 = arith.addf %318, %322 : vector<4x256xf32>
    %c0_160 = arith.constant 0 : index
    %c144_161 = arith.constant 144 : index
    %324 = vector.load %arg9[%c0_160, %c144_161] : memref<4x512xf32, #tpu.memory_space<vmem>>, vector<4x256xf32>
    %c0_162 = arith.constant 0 : index
    %c6_163 = arith.constant 6 : index
    %325 = vector.load %arg4[%c0_162, %c6_163] : memref<4x11xf32, #tpu.memory_space<vmem>>, vector<4x1xf32>
    %326 = vector.broadcast %325 : vector<4x1xf32> to vector<4x256xf32>
    %327 = arith.mulf %326, %324 : vector<4x256xf32>
    %328 = arith.addf %323, %327 : vector<4x256xf32>
    %c0_164 = arith.constant 0 : index
    %c160 = arith.constant 160 : index
    %329 = vector.load %arg9[%c0_164, %c160] : memref<4x512xf32, #tpu.memory_space<vmem>>, vector<4x256xf32>
    %c0_165 = arith.constant 0 : index
    %c7_166 = arith.constant 7 : index
    %330 = vector.load %arg4[%c0_165, %c7_166] : memref<4x11xf32, #tpu.memory_space<vmem>>, vector<4x1xf32>
    %331 = vector.broadcast %330 : vector<4x1xf32> to vector<4x256xf32>
    %332 = arith.mulf %331, %329 : vector<4x256xf32>
    %333 = arith.addf %328, %332 : vector<4x256xf32>
    %c0_167 = arith.constant 0 : index
    %c176 = arith.constant 176 : index
    %334 = vector.load %arg9[%c0_167, %c176] : memref<4x512xf32, #tpu.memory_space<vmem>>, vector<4x256xf32>
    %c0_168 = arith.constant 0 : index
    %c8_169 = arith.constant 8 : index
    %335 = vector.load %arg4[%c0_168, %c8_169] : memref<4x11xf32, #tpu.memory_space<vmem>>, vector<4x1xf32>
    %336 = vector.broadcast %335 : vector<4x1xf32> to vector<4x256xf32>
    %337 = arith.mulf %336, %334 : vector<4x256xf32>
    %338 = arith.addf %333, %337 : vector<4x256xf32>
    %c0_170 = arith.constant 0 : index
    %c192 = arith.constant 192 : index
    %339 = vector.load %arg9[%c0_170, %c192] : memref<4x512xf32, #tpu.memory_space<vmem>>, vector<4x256xf32>
    %c0_171 = arith.constant 0 : index
    %c9_172 = arith.constant 9 : index
    %340 = vector.load %arg4[%c0_171, %c9_172] : memref<4x11xf32, #tpu.memory_space<vmem>>, vector<4x1xf32>
    %341 = vector.broadcast %340 : vector<4x1xf32> to vector<4x256xf32>
    %342 = arith.mulf %341, %339 : vector<4x256xf32>
    %343 = arith.addf %338, %342 : vector<4x256xf32>
    %c0_173 = arith.constant 0 : index
    %c208 = arith.constant 208 : index
    %344 = vector.load %arg9[%c0_173, %c208] : memref<4x512xf32, #tpu.memory_space<vmem>>, vector<4x256xf32>
    %c0_174 = arith.constant 0 : index
    %c10_175 = arith.constant 10 : index
    %345 = vector.load %arg4[%c0_174, %c10_175] : memref<4x11xf32, #tpu.memory_space<vmem>>, vector<4x1xf32>
    %346 = vector.broadcast %345 : vector<4x1xf32> to vector<4x256xf32>
    %347 = arith.mulf %346, %344 : vector<4x256xf32>
    %348 = arith.addf %343, %347 : vector<4x256xf32>
    %c0_176 = arith.constant 0 : index
    %c8_177 = arith.constant 8 : index
    %c0_178 = arith.constant 0 : index
    %349 = vector.load %arg6[%c0_176, %c8_177, %c0_178] : memref<1x12x256xf32, #tpu.memory_space<vmem>>, vector<1x4x256xf32>
    %350 = vector.shape_cast %349 : vector<1x4x256xf32> to vector<4x256xf32>
    %351 = vector.shape_cast %348 : vector<4x256xf32> to vector<1x4x256xf32>
    tpu.vector_store %arg6[%c0_176, %c8_177, %c0_178], %351 {strides = array<i32>} : memref<1x12x256xf32, #tpu.memory_space<vmem>>, vector<1x4x256xf32>,
    return
  }
  func.func @transform_0(%arg0: i32) -> (i32, i32, i32) {
    %c0_i32 = arith.constant 0 : i32
    %c0_i32_0 = arith.constant 0 : i32
    %c0_i32_1 = arith.constant 0 : i32
    return %arg0, %c0_i32, %c0_i32_0 : i32, i32, i32
  }
  func.func @transform_1(%arg0: i32) -> (i32, i32) {
    %c0_i32 = arith.constant 0 : i32
    %c0_i32_0 = arith.constant 0 : i32
    %c0_i32_1 = arith.constant 0 : i32
    return %c0_i32, %c0_i32_0 : i32, i32
  }
  func.func @transform_2(%arg0: i32) -> (i32, i32) {
    %c0_i32 = arith.constant 0 : i32
    %c0_i32_0 = arith.constant 0 : i32
    %c0_i32_1 = arith.constant 0 : i32
    return %c0_i32, %c0_i32_0 : i32, i32
  }
  func.func @transform_3(%arg0: i32) -> (i32, i32) {
    %c0_i32 = arith.constant 0 : i32
    %c0_i32_0 = arith.constant 0 : i32
    %c0_i32_1 = arith.constant 0 : i32
    return %c0_i32, %c0_i32_0 : i32, i32
  }
  func.func @transform_4(%arg0: i32) -> (i32, i32, i32) {
    %c0_i32 = arith.constant 0 : i32
    %c0_i32_0 = arith.constant 0 : i32
    %c0_i32_1 = arith.constant 0 : i32
    %c0_i32_2 = arith.constant 0 : i32
    return %c0_i32, %c0_i32_0, %c0_i32_1 : i32, i32, i32
  }
  func.func @transform_5(%arg0: i32) -> (i32, i32, i32) {
    %c0_i32 = arith.constant 0 : i32
    %c0_i32_0 = arith.constant 0 : i32
    %c0_i32_1 = arith.constant 0 : i32
    return %arg0, %c0_i32, %c0_i32_0 : i32, i32, i32
  }
}

</mosaic_0001>

<llo_original>
// kernel: tpu_custom_call.1
$region0: #{tpu_custom_call.1}
  #allocation0 [shape = 'u32[]', space=smem, size = 0x4, offset = 0x4, fixed_abs, tag = 'smem constant byte address 0x4 - core index']
  #allocation1 [shape = 'u32[72,128]{1,0:T(1,128)}', space=vmem, size = 0x9000, scoped, tag = 'internal scratch']
  #allocation2 [shape = 'f32[4,512]{1,0:T(4,128)}', space=vmem, size = 0x2000, scoped, tag = 'scratch operand']
  #allocation3 [shape = 'f32[4,512]{1,0:T(4,128)}', space=vmem, size = 0x2000, scoped, tag = 'scratch operand']
  #allocation4 [shape = 'f32[4,512]{1,0:T(4,128)}', space=vmem, size = 0x2000, scoped, tag = 'scratch operand']
  %s0 = inlined_call_operand.vmem [shape: f32[2,12,256], index: 0, kind: input, shape index: {}]
  %s1 = inlined_call_operand.vmem [shape: f32[4,9], index: 1, kind: input, shape index: {}]
  %s2 = inlined_call_operand.vmem [shape: f32[4,11], index: 2, kind: input, shape index: {}]
  %s3 = inlined_call_operand.vmem [shape: f32[4,11], index: 3, kind: input, shape index: {}]
  %s4 = inlined_call_operand.vmem [shape: f32[3,4,1], index: 4, kind: input, shape index: {}]
  %s5 = inlined_call_operand.vmem [shape: f32[2,12,256], index: 5, kind: output, shape index: {}]
  %s6 = sld [smem:[#allocation0]]
  $region53: #{tpu_custom_call.1} parent=0
    _
  %s8 = ssub.s32 1, %s6
  %s9 = scalar_select 0, %s8, %s6
  loop: start=0, step=1, limit=4
  $region2: #{tpu_custom_call.1} parent=0 // loop_pre_header
    _
  $region3: #{tpu_custom_call.1} parent=0 // loop_header
    %s11 = sphi 0, %s15
    %p12 = scmp.ge.s32.totalorder %s11, 4
    %s21 = sphi 0, %s23
    %s24 = sphi 0, %s21
    %s25 = sphi 0, %s24
    %s41 = sphi 0, %s25
    %s45 = sphi 0, %s45
    %s47 = sphi 0, %s45
    %s48 = sphi 0, %s47
    %s62 = sphi 0, %s48
    %s66 = sphi 0, %s66
    %s68 = sphi 0, %s66
    %s69 = sphi 0, %s68
    %s83 = sphi 0, %s69
    %s87 = sphi 0, %s87
    %s89 = sphi 0, %s87
    %s90 = sphi 0, %s89
    %s104 = sphi 0, %s90
    %s108 = sphi 0, %s108
    %s110 = sphi 0, %s108
    %s111 = sphi 0, %s110
    %s125 = sphi 0, %s111
    %s131 = sphi 0, %s133
    %s134 = sphi 0, %s131
    %s135 = sphi 0, %s134
    %s151 = sphi 0, %s135
  $region4: #{tpu_custom_call.1} parent=0 // loop_header_branch
    %14 = sbr.rel (%p12) target = $region8
  $region5: #{tpu_custom_call.1} parent=0 // loop_body
    %s16 = ssub.s32 %s11, 1
    %s17 = ssub.s32 %s11, 2
    %s18 = sadd.s32 %s11, 1
    %s19 = ssub.s32 %s11, %s18
    %p20 = scmp.eq.s32.totalorder %s19, 0
    %s22 = sadd.s32 %s21, 1
    %s23 = scalar_select %p20, %s21, %s22
    %p26 = pneg %p20
    %p27 = scmp.eq.s32.totalorder %s11, 1
    %p28 = por %p26, %p27
    %p29 = scmp.ne.s32.totalorder %s21, %s24
    %p30 = scmp.eq.s32.totalorder %s11, 0
    %p31 = por %p29, %p30
    %p32 = scmp.ne.s32.totalorder %s21, %s24
    %p33 = scmp.eq.s32.totalorder %s16, 1
    %p34 = por %p32, %p33
    %p35 = scmp.ne.s32.totalorder %s24, %s25
    %p36 = scmp.eq.s32.totalorder %s16, 0
    %p37 = por %p35, %p36
    %p38 = scmp.ne.s32.totalorder %s24, %s25
    %p39 = scmp.eq.s32.totalorder %s17, 1
    %p40 = por %p38, %p39
    %p42 = scmp.ne.s32.totalorder %s25, %s41
    %p43 = scmp.eq.s32.totalorder %s17, 0
    %p44 = por %p42, %p43
    %s46 = sadd.s32 %s45, 1
    %p49 = scmp.eq.s32.totalorder %s11, 1
    %p50 = scmp.ne.s32.totalorder %s45, %s47
    %p51 = scmp.eq.s32.totalorder %s11, 0
    %p52 = por %p50, %p51
    %p53 = scmp.ne.s32.totalorder %s45, %s47
    %p54 = scmp.eq.s32.totalorder %s16, 1
    %p55 = por %p53, %p54
    %p56 = scmp.ne.s32.totalorder %s47, %s48
    %p57 = scmp.eq.s32.totalorder %s16, 0
    %p58 = por %p56, %p57
    %p59 = scmp.ne.s32.totalorder %s47, %s48
    %p60 = scmp.eq.s32.totalorder %s17, 1
    %p61 = por %p59, %p60
    %p63 = scmp.ne.s32.totalorder %s48, %s62
    %p64 = scmp.eq.s32.totalorder %s17, 0
    %p65 = por %p63, %p64
    %s67 = sadd.s32 %s66, 1
    %p70 = scmp.eq.s32.totalorder %s11, 1
    %p71 = scmp.ne.s32.totalorder %s66, %s68
    %p72 = scmp.eq.s32.totalorder %s11, 0
    %p73 = por %p71, %p72
    %p74 = scmp.ne.s32.totalorder %s66, %s68
    %p75 = scmp.eq.s32.totalorder %s16, 1
    %p76 = por %p74, %p75
    %p77 = scmp.ne.s32.totalorder %s68, %s69
    %p78 = scmp.eq.s32.totalorder %s16, 0
    %p79 = por %p77, %p78
    %p80 = scmp.ne.s32.totalorder %s68, %s69
    %p81 = scmp.eq.s32.totalorder %s17, 1
    %p82 = por %p80, %p81
    %p84 = scmp.ne.s32.totalorder %s69, %s83
    %p85 = scmp.eq.s32.totalorder %s17, 0
    %p86 = por %p84, %p85
    %s88 = sadd.s32 %s87, 1
    %p91 = scmp.eq.s32.totalorder %s11, 1
    %p92 = scmp.ne.s32.totalorder %s87, %s89
    %p93 = scmp.eq.s32.totalorder %s11, 0
    %p94 = por %p92, %p93
    %p95 = scmp.ne.s32.totalorder %s87, %s89
    %p96 = scmp.eq.s32.totalorder %s16, 1
    %p97 = por %p95, %p96
    %p98 = scmp.ne.s32.totalorder %s89, %s90
    %p99 = scmp.eq.s32.totalorder %s16, 0
    %p100 = por %p98, %p99
    %p101 = scmp.ne.s32.totalorder %s89, %s90
    %p102 = scmp.eq.s32.totalorder %s17, 1
    %p103 = por %p101, %p102
    %p105 = scmp.ne.s32.totalorder %s90, %s104
    %p106 = scmp.eq.s32.totalorder %s17, 0
    %p107 = por %p105, %p106
    %s109 = sadd.s32 %s108, 1
    %p112 = scmp.eq.s32.totalorder %s11, 1
    %p113 = scmp.ne.s32.totalorder %s108, %s110
    %p114 = scmp.eq.s32.totalorder %s11, 0
    %p115 = por %p113, %p114
    %p116 = scmp.ne.s32.totalorder %s108, %s110
    %p117 = scmp.eq.s32.totalorder %s16, 1
    %p118 = por %p116, %p117
    %p119 = scmp.ne.s32.totalorder %s110, %s111
    %p120 = scmp.eq.s32.totalorder %s16, 0
    %p121 = por %p119, %p120
    %p122 = scmp.ne.s32.totalorder %s110, %s111
    %p123 = scmp.eq.s32.totalorder %s17, 1
    %p124 = por %p122, %p123
    %p126 = scmp.ne.s32.totalorder %s111, %s125
    %p127 = scmp.eq.s32.totalorder %s17, 0
    %p128 = por %p126, %p127
    %s129 = ssub.s32 %s11, %s18
    %p130 = scmp.eq.s32.totalorder %s129, 0
    %s132 = sadd.s32 %s131, 1
    %s133 = scalar_select %p130, %s131, %s132
    %p136 = pneg %p130
    %p137 = scmp.eq.s32.totalorder %s11, 1
    %p138 = por %p136, %p137
    %p139 = scmp.ne.s32.totalorder %s131, %s134
    %p140 = scmp.eq.s32.totalorder %s11, 0
    %p141 = por %p139, %p140
    %p142 = scmp.ne.s32.totalorder %s131, %s134
    %p143 = scmp.eq.s32.totalorder %s16, 1
    %p144 = por %p142, %p143
    %p145 = scmp.ne.s32.totalorder %s134, %s135
    %p146 = scmp.eq.s32.totalorder %s16, 0
    %p147 = por %p145, %p146
    %p148 = scmp.ne.s32.totalorder %s134, %s135
    %p149 = scmp.eq.s32.totalorder %s17, 1
    %p150 = por %p148, %p149
    %p152 = scmp.ne.s32.totalorder %s135, %s151
    %p153 = scmp.eq.s32.totalorder %s17, 0
    %p154 = por %p152, %p153
    %p155 = scmp.le.s32.totalorder 1, %s11
    %p156 = scmp.lt.s32.totalorder %s11, 3
    %p157 = pnand %p155, %p156
    %p158 = pneg %p157
    // Predicated region
    $region9: #{tpu_custom_call.1} parent=5 // pred_check
      _
    $region10: #{tpu_custom_call.1} parent=5 // pred_check_branch
      %160 = sbr.rel (%p157) target = $region12
    $region11: #{tpu_custom_call.1} parent=5 // pred_region
      %s161 = ssub.s32 %s11, 1
      // Predicated region
      $region13: #{tpu_custom_call.1} parent=11 // pred_check
        %p162 = pneg %p58
      $region14: #{tpu_custom_call.1} parent=11 // pred_check_branch
        %164 = sbr.rel (%p162) target = $region16
      $region15: #{tpu_custom_call.1} parent=11 // pred_region
        _
      $region16: #{tpu_custom_call.1} parent=11 // pred_fallthru
        _
      // Predicated region
      $region17: #{tpu_custom_call.1} parent=11 // pred_check
        %p165 = pneg %p79
      $region18: #{tpu_custom_call.1} parent=11 // pred_check_branch
        %167 = sbr.rel (%p165) target = $region20
      $region19: #{tpu_custom_call.1} parent=11 // pred_region
        _
      $region20: #{tpu_custom_call.1} parent=11 // pred_fallthru
        _
      // Predicated region
      $region21: #{tpu_custom_call.1} parent=11 // pred_check
        %p168 = pneg %p100
      $region22: #{tpu_custom_call.1} parent=11 // pred_check_branch
        %170 = sbr.rel (%p168) target = $region24
      $region23: #{tpu_custom_call.1} parent=11 // pred_region
        _
      $region24: #{tpu_custom_call.1} parent=11 // pred_fallthru
        _
      // Predicated region
      $region25: #{tpu_custom_call.1} parent=11 // pred_check
        %p171 = pneg %p121
      $region26: #{tpu_custom_call.1} parent=11 // pred_check_branch
        %173 = sbr.rel (%p171) target = $region28
      $region27: #{tpu_custom_call.1} parent=11 // pred_region
        _
      $region28: #{tpu_custom_call.1} parent=11 // pred_fallthru
        _
    $region12: #{tpu_custom_call.1} parent=5 // pred_fallthru
      _
    %p174 = scmp.lt.s32.totalorder %s11, 2
    // Predicated region
    $region29: #{tpu_custom_call.1} parent=5 // pred_check
      %p175 = pneg %p174
    $region30: #{tpu_custom_call.1} parent=5 // pred_check_branch
      %177 = sbr.rel (%p175) target = $region32
    $region31: #{tpu_custom_call.1} parent=5 // pred_region
      // Predicated region
      $region33: #{tpu_custom_call.1} parent=31 // pred_check
        %p178 = pneg %p31
      $region34: #{tpu_custom_call.1} parent=31 // pred_check_branch
        %180 = sbr.rel (%p178) target = $region36
      $region35: #{tpu_custom_call.1} parent=31 // pred_region
        %p181 = scmp.lt.s32.totalorder %s11, 1
        %s182 = scalar_select %p181, %s11, 1
        %s183 = smul.addr %s182, 4
        %s184 = smul.addr %s183, 8
        %s185 = scalar_lea.vmem %s0, %s184
      $region36: #{tpu_custom_call.1} parent=31 // pred_fallthru
        _
    $region32: #{tpu_custom_call.1} parent=5 // pred_fallthru
      _
    %p186 = scmp.le.s32.totalorder 1, %s11
    %p187 = scmp.lt.s32.totalorder %s11, 3
    %p188 = pnand %p186, %p187
    %p189 = pneg %p188
    // Predicated region
    $region37: #{tpu_custom_call.1} parent=5 // pred_check
      _
    $region38: #{tpu_custom_call.1} parent=5 // pred_check_branch
      %191 = sbr.rel (%p188) target = $region40
    $region39: #{tpu_custom_call.1} parent=5 // pred_region
      %s192 = ssub.s32 %s11, 1
      %p193 = scmp.lt.s32.totalorder %s16, 1
      %s194 = scalar_select %p193, %s16, 1
      %s195 = smul.addr %s194, 4
      %s196 = smul.addr %s195, 8
      %s197 = scalar_lea.vmem %s0, %s196
      %p198 = pneg %p37
      %p199 = pneg %p34
      %p200 = pneg %p58
      %p201 = pneg %p55
      %p202 = pneg %p79
      %p203 = pneg %p76
      %p204 = pneg %p100
      %p205 = pneg %p97
      %p206 = pneg %p121
      %p207 = pneg %p118
      %p208 = pneg %p147
      %p209 = pneg %p144
      %p210 = scmp.lt.s32.totalorder %s16, 1
      %s211 = scalar_select %p210, %s16, 1
      %s212 = smul.addr %s211, 4
      %s213 = smul.addr %s212, 8
      %s214 = scalar_lea.vmem %s5, %s213
      %p215 = scmp.lt.s32.totalorder %s16, 1
      %s216 = scalar_select %p215, %s16, 1
      %s217 = smul.addr %s216, 4
      %s218 = smul.addr %s217, 8
      %s219 = scalar_lea.vmem %s0, %s218
      %p220 = scmp.lt.s32.totalorder %s16, 1
      %s221 = scalar_select %p220, %s16, 1
      %s222 = smul.addr %s221, 4
      %s223 = smul.addr %s222, 8
      %s224 = scalar_lea.vmem %s5, %s223
      %225 = vst [vmem:[#allocation2] sm:$0xf] 0.0
      %226 = vst [vmem:[#allocation2 + $0xc] sm:$0xf] 0.0
      %227 = vst [vmem:[#allocation3] sm:$0xf] 0.0
      %228 = vst [vmem:[#allocation3 + $0xc] sm:$0xf] 0.0
      %229 = vst [vmem:[#allocation4] sm:$0xf] 0.0
      %230 = vst [vmem:[#allocation4 + $0xc] sm:$0xf] 0.0
      %v231 = vld [vmem:[%s219] sm:$0xf]
      %v232 = vld [vmem:[%s219 + $0x8] sm:$0xf]
      %v235 = vrot.slane %v232, 4
      %vm236 = vcmask 1043456
      %v237 = vsel %vm236, %v231, %v235
      %239 = vst [vmem:[#allocation2 + $0x4] sm:$0xff] %v237
      %v240 = vld [vmem:[%s219] sm:$0xf0]
      %v241 = vld [vmem:[%s219 + $0x8] sm:$0xf0]
      %244 = vst.sshfl [vmem:[#allocation1] sm:$0xff pattern:$0x75316420] %v240
      %245 = vst.sshfl [vmem:[#allocation1 + $0x8] sm:$0xff pattern:$0x75316420] %v241
      %s246 = scalar_lea.vmem [#allocation1], 1
      %v247 = vld [vmem:[%s246] ss:$2 sm:$0xff]
      %249 = vst [vmem:[#allocation3 + $0x4] sm:$0xff] %v247
      %v250 = vld [vmem:[%s219 + $0x10] sm:$0xf]
      %v251 = vld [vmem:[%s219 + $0x18] sm:$0xf]
      %v254 = vrot.slane %v251, 4
      %v255 = vsel %vm236, %v250, %v254
      %257 = vst [vmem:[#allocation4 + $0x4] sm:$0xff] %v255
      %v258 = vlaneseq
      %v259 = vand.u32 %v258, 127
      %v260 = vadd.s32 %v259, 128
      %v261 = vand.u32 %v259, 15
      %v262 = vand.u32 %v260, 15
      %v263 = vadd.s32 %v261, 4294967291
      %v264 = vadd.s32 %v262, 4294967291
      %vm265 = vcmp.ge.s32.totalorder %v263, 0
      %vm266 = vcmp.ge.s32.totalorder %v264, 0
      %vm267 = vcmp.lt.s32.totalorder %v263, 16
      %vm268 = vcmp.lt.s32.totalorder %v264, 16
      %vm269 = vmand %vm265, %vm267
      %vm270 = vmand %vm266, %vm268
      %v271 = vadd.s32 %v261, 4294967292
      %v272 = vadd.s32 %v262, 4294967292
      %vm273 = vcmp.ge.s32.totalorder %v271, 0
      %vm274 = vcmp.ge.s32.totalorder %v272, 0
      %vm275 = vcmp.lt.s32.totalorder %v271, 16
      %vm276 = vcmp.lt.s32.totalorder %v272, 16
      %vm277 = vmand %vm273, %vm275
      %vm278 = vmand %vm274, %vm276
      %v279 = vadd.s32 %v261, 4294967293
      %v280 = vadd.s32 %v262, 4294967293
      %vm281 = vcmp.ge.s32.totalorder %v279, 0
      %vm282 = vcmp.ge.s32.totalorder %v280, 0
      %vm283 = vcmp.lt.s32.totalorder %v279, 16
      %vm284 = vcmp.lt.s32.totalorder %v280, 16
      %vm285 = vmand %vm281, %vm283
      %vm286 = vmand %vm282, %vm284
      %v287 = vadd.s32 %v261, 4294967294
      %v288 = vadd.s32 %v262, 4294967294
      %vm289 = vcmp.ge.s32.totalorder %v287, 0
      %vm290 = vcmp.ge.s32.totalorder %v288, 0
      %vm291 = vcmp.lt.s32.totalorder %v287, 16
      %vm292 = vcmp.lt.s32.totalorder %v288, 16
      %vm293 = vmand %vm289, %vm291
      %vm294 = vmand %vm290, %vm292
      %v295 = vadd.s32 %v261, 4294967295
      %v296 = vadd.s32 %v262, 4294967295
      %vm297 = vcmp.ge.s32.totalorder %v295, 0
      %vm298 = vcmp.ge.s32.totalorder %v296, 0
      %vm299 = vcmp.lt.s32.totalorder %v295, 16
      %vm300 = vcmp.lt.s32.totalorder %v296, 16
      %vm301 = vmand %vm297, %vm299
      %vm302 = vmand %vm298, %vm300
      %v303 = vadd.s32 %v261, 1
      %v304 = vadd.s32 %v262, 1
      %vm305 = vcmp.ge.s32.totalorder %v303, 0
      %vm306 = vcmp.ge.s32.totalorder %v304, 0
      %vm307 = vcmp.lt.s32.totalorder %v303, 16
      %vm308 = vcmp.lt.s32.totalorder %v304, 16
      %vm309 = vmand %vm305, %vm307
      %vm310 = vmand %vm306, %vm308
      %v311 = vadd.s32 %v261, 2
      %v312 = vadd.s32 %v262, 2
      %vm313 = vcmp.ge.s32.totalorder %v311, 0
      %vm314 = vcmp.ge.s32.totalorder %v312, 0
      %vm315 = vcmp.lt.s32.totalorder %v311, 16
      %vm316 = vcmp.lt.s32.totalorder %v312, 16
      %vm317 = vmand %vm313, %vm315
      %vm318 = vmand %vm314, %vm316
      %v319 = vadd.s32 %v261, 3
      %v320 = vadd.s32 %v262, 3
      %vm321 = vcmp.ge.s32.totalorder %v319, 0
      %vm322 = vcmp.ge.s32.totalorder %v320, 0
      %vm323 = vcmp.lt.s32.totalorder %v319, 16
      %vm324 = vcmp.lt.s32.totalorder %v320, 16
      %vm325 = vmand %vm321, %vm323
      %vm326 = vmand %vm322, %vm324
      %v327 = vadd.s32 %v261, 4
      %v328 = vadd.s32 %v262, 4
      %vm329 = vcmp.ge.s32.totalorder %v327, 0
      %vm330 = vcmp.ge.s32.totalorder %v328, 0
      %vm331 = vcmp.lt.s32.totalorder %v327, 16
      %vm332 = vcmp.lt.s32.totalorder %v328, 16
      %vm333 = vmand %vm329, %vm331
      %vm334 = vmand %vm330, %vm332
      %v335 = vadd.s32 %v261, 5
      %v336 = vadd.s32 %v262, 5
      %vm337 = vcmp.ge.s32.totalorder %v335, 0
      %vm338 = vcmp.ge.s32.totalorder %v336, 0
      %vm339 = vcmp.lt.s32.totalorder %v335, 16
      %vm340 = vcmp.lt.s32.totalorder %v336, 16
      %vm341 = vmand %vm337, %vm339
      %vm342 = vmand %vm338, %vm340
      %v343 = vld [vmem:[%s4] sm:$0xf]
      %345 = vset.pattern.permute.xlu0 0
      %346 = vperm.xlu0 %345, %v343
      %v347 = vpop.permute.xlu0 %346
      %v349 = vadd.f32 %v347, 0.0
      %v350 = vld [vmem:[#allocation2] sm:$0xff]
      %v351 = vld [vmem:[#allocation2 + $0x8] sm:$0xf]
      %v352 = vsel %vm301, 1, 0
      %v353 = vsel %vm302, 1, 0
      %vm354 = vcmp.eq.s32.totalorder %v352, 1
      %vm355 = vcmp.eq.s32.totalorder %v353, 1
      %358 = vst [vmem:[#allocation1] ss:$2 sm:$0xff] %v350
      %s359 = scalar_lea.vmem [#allocation1], 16
      %360 = vst [vmem:[%s359] ss:$2 sm:$0xff] %v351
      %v361 = vld.sshfl [vmem:[#allocation1] sm:$0xff pattern:$0x75316420]
      %v362 = vld.sshfl [vmem:[#allocation1 + $0x8] sm:$0xff pattern:$0x75316420]
      %v363 = vld.sshfl [vmem:[#allocation1 + $0x10] sm:$0xff pattern:$0x75316420]
      %364 = vrot.lane.b32.xlu0 %v361, 17
      %v365 = vpop.permute.xlu0 %364
      %366 = vrot.lane.b32.xlu0 %v362, 17
      %v367 = vpop.permute.xlu0 %366
      %368 = vrot.lane.b32.xlu0 %v363, 17
      %v369 = vpop.permute.xlu0 %368
      %vm370 = vcmask 138240
      %v371 = vsel %vm370, %v365, %v367
      %v372 = vsel %vm370, %v367, %v369
      %v375 = vsel %vm354, %v371, 0.0
      %v376 = vsel %vm355, %v372, 0.0
      %v377 = vld [vmem:[%s1] sm:$0xf]
      %379 = vset.pattern.permute.xlu0 0
      %380 = vperm.xlu0 %379, %v377
      %v381 = vpop.permute.xlu0 %380
      %v383 = vmul.f32 %v381, %v375
      %v384 = vmul.f32 %v381, %v376
      %v385 = vadd.f32 %v349, %v383
      %v386 = vadd.f32 %v349, %v384
      %v387 = vld [vmem:[#allocation2] sm:$0xff]
      %v388 = vld [vmem:[#allocation2 + $0x8] sm:$0xf]
      %389 = vset.pattern.permute.xlu0 1
      %390 = vperm.xlu0 %389, %v377
      %v391 = vpop.permute.xlu0 %390
      %395 = vst [vmem:[#allocation1] ss:$2 sm:$0xff] %v387
      %s396 = scalar_lea.vmem [#allocation1], 16
      %397 = vst [vmem:[%s396] ss:$2 sm:$0xff] %v388
      %v398 = vld.sshfl [vmem:[#allocation1] sm:$0xff pattern:$0x75316420]
      %v399 = vld.sshfl [vmem:[#allocation1 + $0x8] sm:$0xff pattern:$0x75316420]
      %v400 = vld.sshfl [vmem:[#allocation1 + $0x10] sm:$0xff pattern:$0x75316420]
      %401 = vrot.lane.b32.xlu0 %v398, 16
      %v402 = vpop.permute.xlu0 %401
      %403 = vrot.lane.b32.xlu0 %v399, 16
      %v404 = vpop.permute.xlu0 %403
      %405 = vrot.lane.b32.xlu0 %v400, 16
      %v406 = vpop.permute.xlu0 %405
      %vm407 = vcmask 130048
      %v408 = vsel %vm407, %v402, %v404
      %v409 = vsel %vm407, %v404, %v406
      %v412 = vmul.f32 %v391, %v408
      %v413 = vmul.f32 %v391, %v409
      %v414 = vadd.f32 %v385, %v412
      %v415 = vadd.f32 %v386, %v413
      %v416 = vld [vmem:[#allocation2] sm:$0xff]
      %v417 = vld [vmem:[#allocation2 + $0x8] sm:$0xf]
      %v418 = vsel %vm309, 1, 0
      %v419 = vsel %vm310, 1, 0
      %vm420 = vcmp.eq.s32.totalorder %v418, 1
      %vm421 = vcmp.eq.s32.totalorder %v419, 1
      %424 = vst [vmem:[#allocation1] ss:$2 sm:$0xff] %v416
      %s425 = scalar_lea.vmem [#allocation1], 16
      %426 = vst [vmem:[%s425] ss:$2 sm:$0xff] %v417
      %v427 = vld.sshfl [vmem:[#allocation1] sm:$0xff pattern:$0x75316420]
      %v428 = vld.sshfl [vmem:[#allocation1 + $0x8] sm:$0xff pattern:$0x75316420]
      %v429 = vld.sshfl [vmem:[#allocation1 + $0x10] sm:$0xff pattern:$0x75316420]
      %430 = vrot.lane.b32.xlu0 %v427, 15
      %v431 = vpop.permute.xlu0 %430
      %432 = vrot.lane.b32.xlu0 %v428, 15
      %v433 = vpop.permute.xlu0 %432
      %434 = vrot.lane.b32.xlu0 %v429, 15
      %v435 = vpop.permute.xlu0 %434
      %vm436 = vcmask 121856
      %v437 = vsel %vm436, %v431, %v433
      %v438 = vsel %vm436, %v433, %v435
      %v441 = vsel %vm420, %v437, 0.0
      %v442 = vsel %vm421, %v438, 0.0
      %v443 = vld [vmem:[%s1] sm:$0xf]
      %445 = vset.pattern.permute.xlu0 2
      %446 = vperm.xlu0 %445, %v443
      %v447 = vpop.permute.xlu0 %446
      %v449 = vmul.f32 %v447, %v441
      %v450 = vmul.f32 %v447, %v442
      %v451 = vadd.f32 %v414, %v449
      %v452 = vadd.f32 %v415, %v450
      %v453 = vld [vmem:[#allocation2] sm:$0xff]
      %v454 = vld [vmem:[#allocation2 + $0x8] sm:$0xf]
      %457 = vst [vmem:[#allocation1] ss:$2 sm:$0xff] %v453
      %s458 = scalar_lea.vmem [#allocation1], 16
      %459 = vst [vmem:[%s458] ss:$2 sm:$0xff] %v454
      %v460 = vld.sshfl [vmem:[#allocation1] sm:$0xff pattern:$0x75316420]
      %v461 = vld.sshfl [vmem:[#allocation1 + $0x8] sm:$0xff pattern:$0x75316420]
      %v462 = vld.sshfl [vmem:[#allocation1 + $0x10] sm:$0xff pattern:$0x75316420]
      %463 = vrot.lane.b32.xlu0 %v460, 1
      %v464 = vpop.permute.xlu0 %463
      %465 = vrot.lane.b32.xlu0 %v461, 1
      %v466 = vpop.permute.xlu0 %465
      %467 = vrot.lane.b32.xlu0 %v462, 1
      %v468 = vpop.permute.xlu0 %467
      %vm469 = vcmask 7168
      %v470 = vsel %vm469, %v464, %v466
      %v471 = vsel %vm469, %v466, %v468
      %v474 = vsel %vm354, %v470, 0.0
      %v475 = vsel %vm355, %v471, 0.0
      %v476 = vld [vmem:[%s1] sm:$0xf]
      %478 = vset.pattern.permute.xlu0 3
      %479 = vperm.xlu0 %478, %v476
      %v480 = vpop.permute.xlu0 %479
      %v482 = vmul.f32 %v480, %v474
      %v483 = vmul.f32 %v480, %v475
      %v484 = vadd.f32 %v451, %v482
      %v485 = vadd.f32 %v452, %v483
      %v486 = vld [vmem:[#allocation2 + $0x4] sm:$0xff]
      %487 = vset.pattern.permute.xlu0 4
      %488 = vperm.xlu0 %487, %v476
      %v489 = vpop.permute.xlu0 %488
      %492 = vst [vmem:[#allocation1] ss:$2 sm:$0xff] %v486
      %v493 = vld.sshfl [vmem:[#allocation1] sm:$0xff pattern:$0x75316420]
      %v494 = vld.sshfl [vmem:[#allocation1 + $0x8] sm:$0xff pattern:$0x75316420]
      %v497 = vmul.f32 %v489, %v493
      %v498 = vmul.f32 %v489, %v494
      %v499 = vadd.f32 %v484, %v497
      %v500 = vadd.f32 %v485, %v498
      %v501 = vld [vmem:[#allocation2 + $0x4] sm:$0xff]
      %v502 = vld [vmem:[#allocation2 + $0xc] sm:$0xf]
      %505 = vst [vmem:[#allocation1] ss:$2 sm:$0xff] %v501
      %s506 = scalar_lea.vmem [#allocation1], 16
      %507 = vst [vmem:[%s506] ss:$2 sm:$0xff] %v502
      %v508 = vld.sshfl [vmem:[#allocation1] sm:$0xff pattern:$0x75316420]
      %v509 = vld.sshfl [vmem:[#allocation1 + $0x8] sm:$0xff pattern:$0x75316420]
      %v510 = vld.sshfl [vmem:[#allocation1 + $0x10] sm:$0xff pattern:$0x75316420]
      %511 = vrot.lane.b32.xlu0 %v508, 127
      %v512 = vpop.permute.xlu0 %511
      %513 = vrot.lane.b32.xlu0 %v509, 127
      %v514 = vpop.permute.xlu0 %513
      %515 = vrot.lane.b32.xlu0 %v510, 127
      %v516 = vpop.permute.xlu0 %515
      %vm517 = vcmask 1039360
      %v518 = vsel %vm517, %v512, %v514
      %v519 = vsel %vm517, %v514, %v516
      %v522 = vsel %vm420, %v518, 0.0
      %v523 = vsel %vm421, %v519, 0.0
      %v524 = vld [vmem:[%s1] sm:$0xf]
      %526 = vset.pattern.permute.xlu0 5
      %527 = vperm.xlu0 %526, %v524
      %v528 = vpop.permute.xlu0 %527
      %v530 = vmul.f32 %v528, %v522
      %v531 = vmul.f32 %v528, %v523
      %v532 = vadd.f32 %v499, %v530
      %v533 = vadd.f32 %v500, %v531
      %v534 = vld [vmem:[#allocation2 + $0x4] sm:$0xff]
      %v535 = vld [vmem:[#allocation2 + $0xc] sm:$0xf]
      %538 = vst [vmem:[#allocation1] ss:$2 sm:$0xff] %v534
      %s539 = scalar_lea.vmem [#allocation1], 16
      %540 = vst [vmem:[%s539] ss:$2 sm:$0xff] %v535
      %v541 = vld.sshfl [vmem:[#allocation1] sm:$0xff pattern:$0x75316420]
      %v542 = vld.sshfl [vmem:[#allocation1 + $0x8] sm:$0xff pattern:$0x75316420]
      %v543 = vld.sshfl [vmem:[#allocation1 + $0x10] sm:$0xff pattern:$0x75316420]
      %544 = vrot.lane.b32.xlu0 %v541, 113
      %v545 = vpop.permute.xlu0 %544
      %546 = vrot.lane.b32.xlu0 %v542, 113
      %v547 = vpop.permute.xlu0 %546
      %548 = vrot.lane.b32.xlu0 %v543, 113
      %v549 = vpop.permute.xlu0 %548
      %vm550 = vcmask 924672
      %v551 = vsel %vm550, %v545, %v547
      %v552 = vsel %vm550, %v547, %v549
      %v555 = vsel %vm354, %v551, 0.0
      %v556 = vsel %vm355, %v552, 0.0
      %v557 = vld [vmem:[%s1] sm:$0xf]
      %559 = vset.pattern.permute.xlu0 6
      %560 = vperm.xlu0 %559, %v557
      %v561 = vpop.permute.xlu0 %560
      %v563 = vmul.f32 %v561, %v555
      %v564 = vmul.f32 %v561, %v556
      %v565 = vadd.f32 %v532, %v563
      %v566 = vadd.f32 %v533, %v564
      %v567 = vld [vmem:[#allocation2 + $0x4] sm:$0xff]
      %v568 = vld [vmem:[#allocation2 + $0xc] sm:$0xf]
      %569 = vset.pattern.permute.xlu0 7
      %570 = vperm.xlu0 %569, %v557
      %v571 = vpop.permute.xlu0 %570
      %575 = vst [vmem:[#allocation1] ss:$2 sm:$0xff] %v567
      %s576 = scalar_lea.vmem [#allocation1], 16
      %577 = vst [vmem:[%s576] ss:$2 sm:$0xff] %v568
      %v578 = vld.sshfl [vmem:[#allocation1] sm:$0xff pattern:$0x75316420]
      %v579 = vld.sshfl [vmem:[#allocation1 + $0x8] sm:$0xff pattern:$0x75316420]
      %v580 = vld.sshfl [vmem:[#allocation1 + $0x10] sm:$0xff pattern:$0x75316420]
      %581 = vrot.lane.b32.xlu0 %v578, 112
      %v582 = vpop.permute.xlu0 %581
      %583 = vrot.lane.b32.xlu0 %v579, 112
      %v584 = vpop.permute.xlu0 %583
      %585 = vrot.lane.b32.xlu0 %v580, 112
      %v586 = vpop.permute.xlu0 %585
      %vm587 = vcmask 916480
      %v588 = vsel %vm587, %v582, %v584
      %v589 = vsel %vm587, %v584, %v586
      %v592 = vmul.f32 %v571, %v588
      %v593 = vmul.f32 %v571, %v589
      %v594 = vadd.f32 %v565, %v592
      %v595 = vadd.f32 %v566, %v593
      %v596 = vld [vmem:[#allocation2 + $0x4] sm:$0xff]
      %v597 = vld [vmem:[#allocation2 + $0xc] sm:$0xf]
      %600 = vst [vmem:[#allocation1] ss:$2 sm:$0xff] %v596
      %s601 = scalar_lea.vmem [#allocation1], 16
      %602 = vst [vmem:[%s601] ss:$2 sm:$0xff] %v597
      %v603 = vld.sshfl [vmem:[#allocation1] sm:$0xff pattern:$0x75316420]
      %v604 = vld.sshfl [vmem:[#allocation1 + $0x8] sm:$0xff pattern:$0x75316420]
      %v605 = vld.sshfl [vmem:[#allocation1 + $0x10] sm:$0xff pattern:$0x75316420]
      %606 = vrot.lane.b32.xlu0 %v603, 111
      %v607 = vpop.permute.xlu0 %606
      %608 = vrot.lane.b32.xlu0 %v604, 111
      %v609 = vpop.permute.xlu0 %608
      %610 = vrot.lane.b32.xlu0 %v605, 111
      %v611 = vpop.permute.xlu0 %610
      %vm612 = vcmask 908288
      %v613 = vsel %vm612, %v607, %v609
      %v614 = vsel %vm612, %v609, %v611
      %v617 = vsel %vm420, %v613, 0.0
      %v618 = vsel %vm421, %v614, 0.0
      %v619 = vld [vmem:[%s1] sm:$0xf]
      %621 = vset.pattern.permute.xlu0 8
      %622 = vperm.xlu0 %621, %v619
      %v623 = vpop.permute.xlu0 %622
      %v625 = vmul.f32 %v623, %v617
      %v626 = vmul.f32 %v623, %v618
      %v627 = vadd.f32 %v594, %v625
      %v628 = vadd.f32 %v595, %v626
      %629 = vst [vmem:[%s224] sm:$0xf] %v627
      %630 = vst [vmem:[%s224 + $0x8] sm:$0xf] %v628
      %s631 = scalar_lea.vmem %s4, 4
      %v632 = vld [vmem:[%s631] sm:$0xf]
      %634 = vset.pattern.permute.xlu0 0
      %635 = vperm.xlu0 %634, %v632
      %v636 = vpop.permute.xlu0 %635
      %v638 = vadd.f32 %v636, 0.0
      %v639 = vld [vmem:[#allocation3] sm:$0xff]
      %v640 = vld [vmem:[#allocation3 + $0x8] sm:$0xf]
      %v641 = vsel %vm269, 1, 0
      %v642 = vsel %vm270, 1, 0
      %vm643 = vcmp.eq.s32.totalorder %v641, 1
      %vm644 = vcmp.eq.s32.totalorder %v642, 1
      %647 = vst [vmem:[#allocation1] ss:$2 sm:$0xff] %v639
      %s648 = scalar_lea.vmem [#allocation1], 16
      %649 = vst [vmem:[%s648] ss:$2 sm:$0xff] %v640
      %v650 = vld.sshfl [vmem:[#allocation1] sm:$0xff pattern:$0x75316420]
      %v651 = vld.sshfl [vmem:[#allocation1 + $0x8] sm:$0xff pattern:$0x75316420]
      %v652 = vld.sshfl [vmem:[#allocation1 + $0x10] sm:$0xff pattern:$0x75316420]
      %653 = vrot.lane.b32.xlu0 %v650, 5
      %v654 = vpop.permute.xlu0 %653
      %655 = vrot.lane.b32.xlu0 %v651, 5
      %v656 = vpop.permute.xlu0 %655
      %657 = vrot.lane.b32.xlu0 %v652, 5
      %v658 = vpop.permute.xlu0 %657
      %vm659 = vcmask 39936
      %v660 = vsel %vm659, %v654, %v656
      %v661 = vsel %vm659, %v656, %v658
      %v664 = vsel %vm643, %v660, 0.0
      %v665 = vsel %vm644, %v661, 0.0
      %v666 = vld [vmem:[%s2] sm:$0xf]
      %668 = vset.pattern.permute.xlu0 0
      %669 = vperm.xlu0 %668, %v666
      %v670 = vpop.permute.xlu0 %669
      %v672 = vmul.f32 %v670, %v664
      %v673 = vmul.f32 %v670, %v665
      %v674 = vadd.f32 %v638, %v672
      %v675 = vadd.f32 %v638, %v673
      %v676 = vld [vmem:[#allocation3] sm:$0xff]
      %v677 = vld [vmem:[#allocation3 + $0x8] sm:$0xf]
      %v678 = vsel %vm277, 1, 0
      %v679 = vsel %vm278, 1, 0
      %vm680 = vcmp.eq.s32.totalorder %v678, 1
      %vm681 = vcmp.eq.s32.totalorder %v679, 1
      %684 = vst [vmem:[#allocation1] ss:$2 sm:$0xff] %v676
      %s685 = scalar_lea.vmem [#allocation1], 16
      %686 = vst [vmem:[%s685] ss:$2 sm:$0xff] %v677
      %v687 = vld.sshfl [vmem:[#allocation1] sm:$0xff pattern:$0x75316420]
      %v688 = vld.sshfl [vmem:[#allocation1 + $0x8] sm:$0xff pattern:$0x75316420]
      %v689 = vld.sshfl [vmem:[#allocation1 + $0x10] sm:$0xff pattern:$0x75316420]
      %690 = vrot.lane.b32.xlu0 %v687, 4
      %v691 = vpop.permute.xlu0 %690
      %692 = vrot.lane.b32.xlu0 %v688, 4
      %v693 = vpop.permute.xlu0 %692
      %694 = vrot.lane.b32.xlu0 %v689, 4
      %v695 = vpop.permute.xlu0 %694
      %vm696 = vcmask 31744
      %v697 = vsel %vm696, %v691, %v693
      %v698 = vsel %vm696, %v693, %v695
      %v701 = vsel %vm680, %v697, 0.0
      %v702 = vsel %vm681, %v698, 0.0
      %v703 = vld [vmem:[%s2] sm:$0xf]
      %705 = vset.pattern.permute.xlu0 1
      %706 = vperm.xlu0 %705, %v703
      %v707 = vpop.permute.xlu0 %706
      %v709 = vmul.f32 %v707, %v701
      %v710 = vmul.f32 %v707, %v702
      %v711 = vadd.f32 %v674, %v709
      %v712 = vadd.f32 %v675, %v710
      %v713 = vld [vmem:[#allocation3] sm:$0xff]
      %v714 = vld [vmem:[#allocation3 + $0x8] sm:$0xf]
      %v715 = vsel %vm285, 1, 0
      %v716 = vsel %vm286, 1, 0
      %vm717 = vcmp.eq.s32.totalorder %v715, 1
      %vm718 = vcmp.eq.s32.totalorder %v716, 1
      %721 = vst [vmem:[#allocation1] ss:$2 sm:$0xff] %v713
      %s722 = scalar_lea.vmem [#allocation1], 16
      %723 = vst [vmem:[%s722] ss:$2 sm:$0xff] %v714
      %v724 = vld.sshfl [vmem:[#allocation1] sm:$0xff pattern:$0x75316420]
      %v725 = vld.sshfl [vmem:[#allocation1 + $0x8] sm:$0xff pattern:$0x75316420]
      %v726 = vld.sshfl [vmem:[#allocation1 + $0x10] sm:$0xff pattern:$0x75316420]
      %727 = vrot.lane.b32.xlu0 %v724, 3
      %v728 = vpop.permute.xlu0 %727
      %729 = vrot.lane.b32.xlu0 %v725, 3
      %v730 = vpop.permute.xlu0 %729
      %731 = vrot.lane.b32.xlu0 %v726, 3
      %v732 = vpop.permute.xlu0 %731
      %vm733 = vcmask 23552
      %v734 = vsel %vm733, %v728, %v730
      %v735 = vsel %vm733, %v730, %v732
      %v738 = vsel %vm717, %v734, 0.0
      %v739 = vsel %vm718, %v735, 0.0
      %v740 = vld [vmem:[%s2] sm:$0xf]
      %742 = vset.pattern.permute.xlu0 2
      %743 = vperm.xlu0 %742, %v740
      %v744 = vpop.permute.xlu0 %743
      %v746 = vmul.f32 %v744, %v738
      %v747 = vmul.f32 %v744, %v739
      %v748 = vadd.f32 %v711, %v746
      %v749 = vadd.f32 %v712, %v747
      %v750 = vld [vmem:[#allocation3] sm:$0xff]
      %v751 = vld [vmem:[#allocation3 + $0x8] sm:$0xf]
      %v752 = vsel %vm293, 1, 0
      %v753 = vsel %vm294, 1, 0
      %vm754 = vcmp.eq.s32.totalorder %v752, 1
      %vm755 = vcmp.eq.s32.totalorder %v753, 1
      %758 = vst [vmem:[#allocation1] ss:$2 sm:$0xff] %v750
      %s759 = scalar_lea.vmem [#allocation1], 16
      %760 = vst [vmem:[%s759] ss:$2 sm:$0xff] %v751
      %v761 = vld.sshfl [vmem:[#allocation1] sm:$0xff pattern:$0x75316420]
      %v762 = vld.sshfl [vmem:[#allocation1 + $0x8] sm:$0xff pattern:$0x75316420]
      %v763 = vld.sshfl [vmem:[#allocation1 + $0x10] sm:$0xff pattern:$0x75316420]
      %764 = vrot.lane.b32.xlu0 %v761, 2
      %v765 = vpop.permute.xlu0 %764
      %766 = vrot.lane.b32.xlu0 %v762, 2
      %v767 = vpop.permute.xlu0 %766
      %768 = vrot.lane.b32.xlu0 %v763, 2
      %v769 = vpop.permute.xlu0 %768
      %vm770 = vcmask 15360
      %v771 = vsel %vm770, %v765, %v767
      %v772 = vsel %vm770, %v767, %v769
      %v775 = vsel %vm754, %v771, 0.0
      %v776 = vsel %vm755, %v772, 0.0
      %v777 = vld [vmem:[%s2] sm:$0xf]
      %779 = vset.pattern.permute.xlu0 3
      %780 = vperm.xlu0 %779, %v777
      %v781 = vpop.permute.xlu0 %780
      %v783 = vmul.f32 %v781, %v775
      %v784 = vmul.f32 %v781, %v776
      %v785 = vadd.f32 %v748, %v783
      %v786 = vadd.f32 %v749, %v784
      %v787 = vld [vmem:[#allocation3] sm:$0xff]
      %v788 = vld [vmem:[#allocation3 + $0x8] sm:$0xf]
      %791 = vst [vmem:[#allocation1] ss:$2 sm:$0xff] %v787
      %s792 = scalar_lea.vmem [#allocation1], 16
      %793 = vst [vmem:[%s792] ss:$2 sm:$0xff] %v788
      %v794 = vld.sshfl [vmem:[#allocation1] sm:$0xff pattern:$0x75316420]
      %v795 = vld.sshfl [vmem:[#allocation1 + $0x8] sm:$0xff pattern:$0x75316420]
      %v796 = vld.sshfl [vmem:[#allocation1 + $0x10] sm:$0xff pattern:$0x75316420]
      %797 = vrot.lane.b32.xlu0 %v794, 1
      %v798 = vpop.permute.xlu0 %797
      %799 = vrot.lane.b32.xlu0 %v795, 1
      %v800 = vpop.permute.xlu0 %799
      %801 = vrot.lane.b32.xlu0 %v796, 1
      %v802 = vpop.permute.xlu0 %801
      %v803 = vsel %vm469, %v798, %v800
      %v804 = vsel %vm469, %v800, %v802
      %v807 = vsel %vm354, %v803, 0.0
      %v808 = vsel %vm355, %v804, 0.0
      %v809 = vld [vmem:[%s2] sm:$0xf]
      %811 = vset.pattern.permute.xlu0 4
      %812 = vperm.xlu0 %811, %v809
      %v813 = vpop.permute.xlu0 %812
      %v815 = vmul.f32 %v813, %v807
      %v816 = vmul.f32 %v813, %v808
      %v817 = vadd.f32 %v785, %v815
      %v818 = vadd.f32 %v786, %v816
      %v819 = vld [vmem:[#allocation3 + $0x4] sm:$0xff]
      %820 = vset.pattern.permute.xlu0 5
      %821 = vperm.xlu0 %820, %v809
      %v822 = vpop.permute.xlu0 %821
      %825 = vst [vmem:[#allocation1] ss:$2 sm:$0xff] %v819
      %v826 = vld.sshfl [vmem:[#allocation1] sm:$0xff pattern:$0x75316420]
      %v827 = vld.sshfl [vmem:[#allocation1 + $0x8] sm:$0xff pattern:$0x75316420]
      %v830 = vmul.f32 %v822, %v826
      %v831 = vmul.f32 %v822, %v827
      %v832 = vadd.f32 %v817, %v830
      %v833 = vadd.f32 %v818, %v831
      %v834 = vld [vmem:[#allocation3 + $0x4] sm:$0xff]
      %v835 = vld [vmem:[#allocation3 + $0xc] sm:$0xf]
      %838 = vst [vmem:[#allocation1] ss:$2 sm:$0xff] %v834
      %s839 = scalar_lea.vmem [#allocation1], 16
      %840 = vst [vmem:[%s839] ss:$2 sm:$0xff] %v835
      %v841 = vld.sshfl [vmem:[#allocation1] sm:$0xff pattern:$0x75316420]
      %v842 = vld.sshfl [vmem:[#allocation1 + $0x8] sm:$0xff pattern:$0x75316420]
      %v843 = vld.sshfl [vmem:[#allocation1 + $0x10] sm:$0xff pattern:$0x75316420]
      %844 = vrot.lane.b32.xlu0 %v841, 127
      %v845 = vpop.permute.xlu0 %844
      %846 = vrot.lane.b32.xlu0 %v842, 127
      %v847 = vpop.permute.xlu0 %846
      %848 = vrot.lane.b32.xlu0 %v843, 127
      %v849 = vpop.permute.xlu0 %848
      %v850 = vsel %vm517, %v845, %v847
      %v851 = vsel %vm517, %v847, %v849
      %v854 = vsel %vm420, %v850, 0.0
      %v855 = vsel %vm421, %v851, 0.0
      %v856 = vld [vmem:[%s2] sm:$0xf]
      %858 = vset.pattern.permute.xlu0 6
      %859 = vperm.xlu0 %858, %v856
      %v860 = vpop.permute.xlu0 %859
      %v862 = vmul.f32 %v860, %v854
      %v863 = vmul.f32 %v860, %v855
      %v864 = vadd.f32 %v832, %v862
      %v865 = vadd.f32 %v833, %v863
      %v866 = vld [vmem:[#allocation3 + $0x4] sm:$0xff]
      %v867 = vld [vmem:[#allocation3 + $0xc] sm:$0xf]
      %v868 = vsel %vm317, 1, 0
      %v869 = vsel %vm318, 1, 0
      %vm870 = vcmp.eq.s32.totalorder %v868, 1
      %vm871 = vcmp.eq.s32.totalorder %v869, 1
      %874 = vst [vmem:[#allocation1] ss:$2 sm:$0xff] %v866
      %s875 = scalar_lea.vmem [#allocation1], 16
      %876 = vst [vmem:[%s875] ss:$2 sm:$0xff] %v867
      %v877 = vld.sshfl [vmem:[#allocation1] sm:$0xff pattern:$0x75316420]
      %v878 = vld.sshfl [vmem:[#allocation1 + $0x8] sm:$0xff pattern:$0x75316420]
      %v879 = vld.sshfl [vmem:[#allocation1 + $0x10] sm:$0xff pattern:$0x75316420]
      %880 = vrot.lane.b32.xlu0 %v877, 126
      %v881 = vpop.permute.xlu0 %880
      %882 = vrot.lane.b32.xlu0 %v878, 126
      %v883 = vpop.permute.xlu0 %882
      %884 = vrot.lane.b32.xlu0 %v879, 126
      %v885 = vpop.permute.xlu0 %884
      %vm886 = vcmask 1031168
      %v887 = vsel %vm886, %v881, %v883
      %v888 = vsel %vm886, %v883, %v885
      %v891 = vsel %vm870, %v887, 0.0
      %v892 = vsel %vm871, %v888, 0.0
      %v893 = vld [vmem:[%s2] sm:$0xf]
      %895 = vset.pattern.permute.xlu0 7
      %896 = vperm.xlu0 %895, %v893
      %v897 = vpop.permute.xlu0 %896
      %v899 = vmul.f32 %v897, %v891
      %v900 = vmul.f32 %v897, %v892
      %v901 = vadd.f32 %v864, %v899
      %v902 = vadd.f32 %v865, %v900
      %v903 = vld [vmem:[#allocation3 + $0x4] sm:$0xff]
      %v904 = vld [vmem:[#allocation3 + $0xc] sm:$0xf]
      %v905 = vsel %vm325, 1, 0
      %v906 = vsel %vm326, 1, 0
      %vm907 = vcmp.eq.s32.totalorder %v905, 1
      %vm908 = vcmp.eq.s32.totalorder %v906, 1
      %911 = vst [vmem:[#allocation1] ss:$2 sm:$0xff] %v903
      %s912 = scalar_lea.vmem [#allocation1], 16
      %913 = vst [vmem:[%s912] ss:$2 sm:$0xff] %v904
      %v914 = vld.sshfl [vmem:[#allocation1] sm:$0xff pattern:$0x75316420]
      %v915 = vld.sshfl [vmem:[#allocation1 + $0x8] sm:$0xff pattern:$0x75316420]
      %v916 = vld.sshfl [vmem:[#allocation1 + $0x10] sm:$0xff pattern:$0x75316420]
      %917 = vrot.lane.b32.xlu0 %v914, 125
      %v918 = vpop.permute.xlu0 %917
      %919 = vrot.lane.b32.xlu0 %v915, 125
      %v920 = vpop.permute.xlu0 %919
      %921 = vrot.lane.b32.xlu0 %v916, 125
      %v922 = vpop.permute.xlu0 %921
      %vm923 = vcmask 1022976
      %v924 = vsel %vm923, %v918, %v920
      %v925 = vsel %vm923, %v920, %v922
      %v928 = vsel %vm907, %v924, 0.0
      %v929 = vsel %vm908, %v925, 0.0
      %v930 = vld [vmem:[%s2] sm:$0xf]
      %932 = vset.pattern.permute.xlu0 8
      %933 = vperm.xlu0 %932, %v930
      %v934 = vpop.permute.xlu0 %933
      %v936 = vmul.f32 %v934, %v928
      %v937 = vmul.f32 %v934, %v929
      %v938 = vadd.f32 %v901, %v936
      %v939 = vadd.f32 %v902, %v937
      %v940 = vld [vmem:[#allocation3 + $0x4] sm:$0xff]
      %v941 = vld [vmem:[#allocation3 + $0xc] sm:$0xf]
      %v942 = vsel %vm333, 1, 0
      %v943 = vsel %vm334, 1, 0
      %vm944 = vcmp.eq.s32.totalorder %v942, 1
      %vm945 = vcmp.eq.s32.totalorder %v943, 1
      %948 = vst [vmem:[#allocation1] ss:$2 sm:$0xff] %v940
      %s949 = scalar_lea.vmem [#allocation1], 16
      %950 = vst [vmem:[%s949] ss:$2 sm:$0xff] %v941
      %v951 = vld.sshfl [vmem:[#allocation1] sm:$0xff pattern:$0x75316420]
      %v952 = vld.sshfl [vmem:[#allocation1 + $0x8] sm:$0xff pattern:$0x75316420]
      %v953 = vld.sshfl [vmem:[#allocation1 + $0x10] sm:$0xff pattern:$0x75316420]
      %954 = vrot.lane.b32.xlu0 %v951, 124
      %v955 = vpop.permute.xlu0 %954
      %956 = vrot.lane.b32.xlu0 %v952, 124
      %v957 = vpop.permute.xlu0 %956
      %958 = vrot.lane.b32.xlu0 %v953, 124
      %v959 = vpop.permute.xlu0 %958
      %vm960 = vcmask 1014784
      %v961 = vsel %vm960, %v955, %v957
      %v962 = vsel %vm960, %v957, %v959
      %v965 = vsel %vm944, %v961, 0.0
      %v966 = vsel %vm945, %v962, 0.0
      %v967 = vld [vmem:[%s2] sm:$0xf]
      %969 = vset.pattern.permute.xlu0 9
      %970 = vperm.xlu0 %969, %v967
      %v971 = vpop.permute.xlu0 %970
      %v973 = vmul.f32 %v971, %v965
      %v974 = vmul.f32 %v971, %v966
      %v975 = vadd.f32 %v938, %v973
      %v976 = vadd.f32 %v939, %v974
      %v977 = vld [vmem:[#allocation3 + $0x4] sm:$0xff]
      %v978 = vld [vmem:[#allocation3 + $0xc] sm:$0xf]
      %v979 = vsel %vm341, 1, 0
      %v980 = vsel %vm342, 1, 0
      %vm981 = vcmp.eq.s32.totalorder %v979, 1
      %vm982 = vcmp.eq.s32.totalorder %v980, 1
      %985 = vst [vmem:[#allocation1] ss:$2 sm:$0xff] %v977
      %s986 = scalar_lea.vmem [#allocation1], 16
      %987 = vst [vmem:[%s986] ss:$2 sm:$0xff] %v978
      %v988 = vld.sshfl [vmem:[#allocation1] sm:$0xff pattern:$0x75316420]
      %v989 = vld.sshfl [vmem:[#allocation1 + $0x8] sm:$0xff pattern:$0x75316420]
      %v990 = vld.sshfl [vmem:[#allocation1 + $0x10] sm:$0xff pattern:$0x75316420]
      %991 = vrot.lane.b32.xlu0 %v988, 123
      %v992 = vpop.permute.xlu0 %991
      %993 = vrot.lane.b32.xlu0 %v989, 123
      %v994 = vpop.permute.xlu0 %993
      %995 = vrot.lane.b32.xlu0 %v990, 123
      %v996 = vpop.permute.xlu0 %995
      %vm997 = vcmask 1006592
      %v998 = vsel %vm997, %v992, %v994
      %v999 = vsel %vm997, %v994, %v996
      %v1002 = vsel %vm981, %v998, 0.0
      %v1003 = vsel %vm982, %v999, 0.0
      %v1004 = vld [vmem:[%s2] sm:$0xf]
      %1006 = vset.pattern.permute.xlu0 10
      %1007 = vperm.xlu0 %1006, %v1004
      %v1008 = vpop.permute.xlu0 %1007
      %v1010 = vmul.f32 %v1008, %v1002
      %v1011 = vmul.f32 %v1008, %v1003
      %v1012 = vadd.f32 %v975, %v1010
      %v1013 = vadd.f32 %v976, %v1011
      %v1016 = vrot.slane %v1012, 4
      %v1017 = vrot.slane %v1013, 4
      %1020 = vst [vmem:[%s224] sm:$0xf0] %v1016
      %1021 = vst [vmem:[%s224 + $0x8] sm:$0xf0] %v1017
      %s1022 = scalar_lea.vmem %s4, 8
      %v1023 = vld [vmem:[%s1022] sm:$0xf]
      %1025 = vset.pattern.permute.xlu0 0
      %1026 = vperm.xlu0 %1025, %v1023
      %v1027 = vpop.permute.xlu0 %1026
      %v1029 = vadd.f32 %v1027, 0.0
      %v1030 = vld [vmem:[#allocation4] sm:$0xff]
      %v1031 = vld [vmem:[#allocation4 + $0x8] sm:$0xf]
      %v1032 = vld [vmem:[%s3] sm:$0xf]
      %1034 = vset.pattern.permute.xlu0 0
      %1035 = vperm.xlu0 %1034, %v1032
      %v1036 = vpop.permute.xlu0 %1035
      %1040 = vst [vmem:[#allocation1] ss:$2 sm:$0xff] %v1030
      %s1041 = scalar_lea.vmem [#allocation1], 16
      %1042 = vst [vmem:[%s1041] ss:$2 sm:$0xff] %v1031
      %v1043 = vld.sshfl [vmem:[#allocation1] sm:$0xff pattern:$0x75316420]
      %v1044 = vld.sshfl [vmem:[#allocation1 + $0x8] sm:$0xff pattern:$0x75316420]
      %v1045 = vld.sshfl [vmem:[#allocation1 + $0x10] sm:$0xff pattern:$0x75316420]
      %1046 = vrot.lane.b32.xlu0 %v1043, 80
      %v1047 = vpop.permute.xlu0 %1046
      %1048 = vrot.lane.b32.xlu0 %v1044, 80
      %v1049 = vpop.permute.xlu0 %1048
      %1050 = vrot.lane.b32.xlu0 %v1045, 80
      %v1051 = vpop.permute.xlu0 %1050
      %vm1052 = vcmask 654336
      %v1053 = vsel %vm1052, %v1047, %v1049
      %v1054 = vsel %vm1052, %v1049, %v1051
      %v1057 = vmul.f32 %v1036, %v1053
      %v1058 = vmul.f32 %v1036, %v1054
      %v1059 = vadd.f32 %v1029, %v1057
      %v1060 = vadd.f32 %v1029, %v1058
      %v1061 = vld [vmem:[#allocation4] sm:$0xff]
      %v1062 = vld [vmem:[#allocation4 + $0x8] sm:$0xf]
      %v1063 = vld [vmem:[%s3] sm:$0xf]
      %1065 = vset.pattern.permute.xlu0 1
      %1066 = vperm.xlu0 %1065, %v1063
      %v1067 = vpop.permute.xlu0 %1066
      %1071 = vst [vmem:[#allocation1] ss:$2 sm:$0xff] %v1061
      %s1072 = scalar_lea.vmem [#allocation1], 16
      %1073 = vst [vmem:[%s1072] ss:$2 sm:$0xff] %v1062
      %v1074 = vld.sshfl [vmem:[#allocation1] sm:$0xff pattern:$0x75316420]
      %v1075 = vld.sshfl [vmem:[#allocation1 + $0x8] sm:$0xff pattern:$0x75316420]
      %v1076 = vld.sshfl [vmem:[#allocation1 + $0x10] sm:$0xff pattern:$0x75316420]
      %1077 = vrot.lane.b32.xlu0 %v1074, 64
      %v1078 = vpop.permute.xlu0 %1077
      %1079 = vrot.lane.b32.xlu0 %v1075, 64
      %v1080 = vpop.permute.xlu0 %1079
      %1081 = vrot.lane.b32.xlu0 %v1076, 64
      %v1082 = vpop.permute.xlu0 %1081
      %vm1083 = vcmask 523264
      %v1084 = vsel %vm1083, %v1078, %v1080
      %v1085 = vsel %vm1083, %v1080, %v1082
      %v1088 = vmul.f32 %v1067, %v1084
      %v1089 = vmul.f32 %v1067, %v1085
      %v1090 = vadd.f32 %v1059, %v1088
      %v1091 = vadd.f32 %v1060, %v1089
      %v1092 = vld [vmem:[#allocation4] sm:$0xff]
      %v1093 = vld [vmem:[#allocation4 + $0x8] sm:$0xf]
      %v1094 = vld [vmem:[%s3] sm:$0xf]
      %1096 = vset.pattern.permute.xlu0 2
      %1097 = vperm.xlu0 %1096, %v1094
      %v1098 = vpop.permute.xlu0 %1097
      %1102 = vst [vmem:[#allocation1] ss:$2 sm:$0xff] %v1092
      %s1103 = scalar_lea.vmem [#allocation1], 16
      %1104 = vst [vmem:[%s1103] ss:$2 sm:$0xff] %v1093
      %v1105 = vld.sshfl [vmem:[#allocation1] sm:$0xff pattern:$0x75316420]
      %v1106 = vld.sshfl [vmem:[#allocation1 + $0x8] sm:$0xff pattern:$0x75316420]
      %v1107 = vld.sshfl [vmem:[#allocation1 + $0x10] sm:$0xff pattern:$0x75316420]
      %1108 = vrot.lane.b32.xlu0 %v1105, 48
      %v1109 = vpop.permute.xlu0 %1108
      %1110 = vrot.lane.b32.xlu0 %v1106, 48
      %v1111 = vpop.permute.xlu0 %1110
      %1112 = vrot.lane.b32.xlu0 %v1107, 48
      %v1113 = vpop.permute.xlu0 %1112
      %vm1114 = vcmask 392192
      %v1115 = vsel %vm1114, %v1109, %v1111
      %v1116 = vsel %vm1114, %v1111, %v1113
      %v1119 = vmul.f32 %v1098, %v1115
      %v1120 = vmul.f32 %v1098, %v1116
      %v1121 = vadd.f32 %v1090, %v1119
      %v1122 = vadd.f32 %v1091, %v1120
      %v1123 = vld [vmem:[#allocation4] sm:$0xff]
      %v1124 = vld [vmem:[#allocation4 + $0x8] sm:$0xf]
      %v1125 = vld [vmem:[%s3] sm:$0xf]
      %1127 = vset.pattern.permute.xlu0 3
      %1128 = vperm.xlu0 %1127, %v1125
      %v1129 = vpop.permute.xlu0 %1128
      %1133 = vst [vmem:[#allocation1] ss:$2 sm:$0xff] %v1123
      %s1134 = scalar_lea.vmem [#allocation1], 16
      %1135 = vst [vmem:[%s1134] ss:$2 sm:$0xff] %v1124
      %v1136 = vld.sshfl [vmem:[#allocation1] sm:$0xff pattern:$0x75316420]
      %v1137 = vld.sshfl [vmem:[#allocation1 + $0x8] sm:$0xff pattern:$0x75316420]
      %v1138 = vld.sshfl [vmem:[#allocation1 + $0x10] sm:$0xff pattern:$0x75316420]
      %1139 = vrot.lane.b32.xlu0 %v1136, 32
      %v1140 = vpop.permute.xlu0 %1139
      %1141 = vrot.lane.b32.xlu0 %v1137, 32
      %v1142 = vpop.permute.xlu0 %1141
      %1143 = vrot.lane.b32.xlu0 %v1138, 32
      %v1144 = vpop.permute.xlu0 %1143
      %vm1145 = vcmask 261120
      %v1146 = vsel %vm1145, %v1140, %v1142
      %v1147 = vsel %vm1145, %v1142, %v1144
      %v1150 = vmul.f32 %v1129, %v1146
      %v1151 = vmul.f32 %v1129, %v1147
      %v1152 = vadd.f32 %v1121, %v1150
      %v1153 = vadd.f32 %v1122, %v1151
      %v1154 = vld [vmem:[#allocation4] sm:$0xff]
      %v1155 = vld [vmem:[#allocation4 + $0x8] sm:$0xf]
      %v1156 = vld [vmem:[%s3] sm:$0xf]
      %1158 = vset.pattern.permute.xlu0 4
      %1159 = vperm.xlu0 %1158, %v1156
      %v1160 = vpop.permute.xlu0 %1159
      %1164 = vst [vmem:[#allocation1] ss:$2 sm:$0xff] %v1154
      %s1165 = scalar_lea.vmem [#allocation1], 16
      %1166 = vst [vmem:[%s1165] ss:$2 sm:$0xff] %v1155
      %v1167 = vld.sshfl [vmem:[#allocation1] sm:$0xff pattern:$0x75316420]
      %v1168 = vld.sshfl [vmem:[#allocation1 + $0x8] sm:$0xff pattern:$0x75316420]
      %v1169 = vld.sshfl [vmem:[#allocation1 + $0x10] sm:$0xff pattern:$0x75316420]
      %1170 = vrot.lane.b32.xlu0 %v1167, 16
      %v1171 = vpop.permute.xlu0 %1170
      %1172 = vrot.lane.b32.xlu0 %v1168, 16
      %v1173 = vpop.permute.xlu0 %1172
      %1174 = vrot.lane.b32.xlu0 %v1169, 16
      %v1175 = vpop.permute.xlu0 %1174
      %v1176 = vsel %vm407, %v1171, %v1173
      %v1177 = vsel %vm407, %v1173, %v1175
      %v1180 = vmul.f32 %v1160, %v1176
      %v1181 = vmul.f32 %v1160, %v1177
      %v1182 = vadd.f32 %v1152, %v1180
      %v1183 = vadd.f32 %v1153, %v1181
      %v1184 = vld [vmem:[#allocation4 + $0x4] sm:$0xff]
      %v1185 = vld [vmem:[%s3] sm:$0xf]
      %1187 = vset.pattern.permute.xlu0 5
      %1188 = vperm.xlu0 %1187, %v1185
      %v1189 = vpop.permute.xlu0 %1188
      %1192 = vst [vmem:[#allocation1] ss:$2 sm:$0xff] %v1184
      %v1193 = vld.sshfl [vmem:[#allocation1] sm:$0xff pattern:$0x75316420]
      %v1194 = vld.sshfl [vmem:[#allocation1 + $0x8] sm:$0xff pattern:$0x75316420]
      %v1197 = vmul.f32 %v1189, %v1193
      %v1198 = vmul.f32 %v1189, %v1194
      %v1199 = vadd.f32 %v1182, %v1197
      %v1200 = vadd.f32 %v1183, %v1198
      %v1201 = vld [vmem:[#allocation4 + $0x4] sm:$0xff]
      %v1202 = vld [vmem:[#allocation4 + $0xc] sm:$0xf]
      %v1203 = vld [vmem:[%s3] sm:$0xf]
      %1205 = vset.pattern.permute.xlu0 6
      %1206 = vperm.xlu0 %1205, %v1203
      %v1207 = vpop.permute.xlu0 %1206
      %1211 = vst [vmem:[#allocation1] ss:$2 sm:$0xff] %v1201
      %s1212 = scalar_lea.vmem [#allocation1], 16
      %1213 = vst [vmem:[%s1212] ss:$2 sm:$0xff] %v1202
      %v1214 = vld.sshfl [vmem:[#allocation1] sm:$0xff pattern:$0x75316420]
      %v1215 = vld.sshfl [vmem:[#allocation1 + $0x8] sm:$0xff pattern:$0x75316420]
      %v1216 = vld.sshfl [vmem:[#allocation1 + $0x10] sm:$0xff pattern:$0x75316420]
      %1217 = vrot.lane.b32.xlu0 %v1214, 112
      %v1218 = vpop.permute.xlu0 %1217
      %1219 = vrot.lane.b32.xlu0 %v1215, 112
      %v1220 = vpop.permute.xlu0 %1219
      %1221 = vrot.lane.b32.xlu0 %v1216, 112
      %v1222 = vpop.permute.xlu0 %1221
      %v1223 = vsel %vm587, %v1218, %v1220
      %v1224 = vsel %vm587, %v1220, %v1222
      %v1227 = vmul.f32 %v1207, %v1223
      %v1228 = vmul.f32 %v1207, %v1224
      %v1229 = vadd.f32 %v1199, %v1227
      %v1230 = vadd.f32 %v1200, %v1228
      %v1231 = vld [vmem:[#allocation4 + $0x4] sm:$0xff]
      %v1232 = vld [vmem:[#allocation4 + $0xc] sm:$0xf]
      %v1233 = vld [vmem:[%s3] sm:$0xf]
      %1235 = vset.pattern.permute.xlu0 7
      %1236 = vperm.xlu0 %1235, %v1233
      %v1237 = vpop.permute.xlu0 %1236
      %1241 = vst [vmem:[#allocation1] ss:$2 sm:$0xff] %v1231
      %s1242 = scalar_lea.vmem [#allocation1], 16
      %1243 = vst [vmem:[%s1242] ss:$2 sm:$0xff] %v1232
      %v1244 = vld.sshfl [vmem:[#allocation1] sm:$0xff pattern:$0x75316420]
      %v1245 = vld.sshfl [vmem:[#allocation1 + $0x8] sm:$0xff pattern:$0x75316420]
      %v1246 = vld.sshfl [vmem:[#allocation1 + $0x10] sm:$0xff pattern:$0x75316420]
      %1247 = vrot.lane.b32.xlu0 %v1244, 96
      %v1248 = vpop.permute.xlu0 %1247
      %1249 = vrot.lane.b32.xlu0 %v1245, 96
      %v1250 = vpop.permute.xlu0 %1249
      %1251 = vrot.lane.b32.xlu0 %v1246, 96
      %v1252 = vpop.permute.xlu0 %1251
      %vm1253 = vcmask 785408
      %v1254 = vsel %vm1253, %v1248, %v1250
      %v1255 = vsel %vm1253, %v1250, %v1252
      %v1258 = vmul.f32 %v1237, %v1254
      %v1259 = vmul.f32 %v1237, %v1255
      %v1260 = vadd.f32 %v1229, %v1258
      %v1261 = vadd.f32 %v1230, %v1259
      %v1262 = vld [vmem:[#allocation4 + $0x4] sm:$0xff]
      %v1263 = vld [vmem:[#allocation4 + $0xc] sm:$0xf]
      %v1264 = vld [vmem:[%s3] sm:$0xf]
      %1266 = vset.pattern.permute.xlu0 8
      %1267 = vperm.xlu0 %1266, %v1264
      %v1268 = vpop.permute.xlu0 %1267
      %1272 = vst [vmem:[#allocation1] ss:$2 sm:$0xff] %v1262
      %s1273 = scalar_lea.vmem [#allocation1], 16
      %1274 = vst [vmem:[%s1273] ss:$2 sm:$0xff] %v1263
      %v1275 = vld.sshfl [vmem:[#allocation1] sm:$0xff pattern:$0x75316420]
      %v1276 = vld.sshfl [vmem:[#allocation1 + $0x8] sm:$0xff pattern:$0x75316420]
      %v1277 = vld.sshfl [vmem:[#allocation1 + $0x10] sm:$0xff pattern:$0x75316420]
      %1278 = vrot.lane.b32.xlu0 %v1275, 80
      %v1279 = vpop.permute.xlu0 %1278
      %1280 = vrot.lane.b32.xlu0 %v1276, 80
      %v1281 = vpop.permute.xlu0 %1280
      %1282 = vrot.lane.b32.xlu0 %v1277, 80
      %v1283 = vpop.permute.xlu0 %1282
      %v1284 = vsel %vm1052, %v1279, %v1281
      %v1285 = vsel %vm1052, %v1281, %v1283
      %v1288 = vmul.f32 %v1268, %v1284
      %v1289 = vmul.f32 %v1268, %v1285
      %v1290 = vadd.f32 %v1260, %v1288
      %v1291 = vadd.f32 %v1261, %v1289
      %v1292 = vld [vmem:[#allocation4 + $0x4] sm:$0xff]
      %v1293 = vld [vmem:[#allocation4 + $0xc] sm:$0xf]
      %v1294 = vld [vmem:[%s3] sm:$0xf]
      %1296 = vset.pattern.permute.xlu0 9
      %1297 = vperm.xlu0 %1296, %v1294
      %v1298 = vpop.permute.xlu0 %1297
      %1302 = vst [vmem:[#allocation1] ss:$2 sm:$0xff] %v1292
      %s1303 = scalar_lea.vmem [#allocation1], 16
      %1304 = vst [vmem:[%s1303] ss:$2 sm:$0xff] %v1293
      %v1305 = vld.sshfl [vmem:[#allocation1] sm:$0xff pattern:$0x75316420]
      %v1306 = vld.sshfl [vmem:[#allocation1 + $0x8] sm:$0xff pattern:$0x75316420]
      %v1307 = vld.sshfl [vmem:[#allocation1 + $0x10] sm:$0xff pattern:$0x75316420]
      %1308 = vrot.lane.b32.xlu0 %v1305, 64
      %v1309 = vpop.permute.xlu0 %1308
      %1310 = vrot.lane.b32.xlu0 %v1306, 64
      %v1311 = vpop.permute.xlu0 %1310
      %1312 = vrot.lane.b32.xlu0 %v1307, 64
      %v1313 = vpop.permute.xlu0 %1312
      %v1314 = vsel %vm1083, %v1309, %v1311
      %v1315 = vsel %vm1083, %v1311, %v1313
      %v1318 = vmul.f32 %v1298, %v1314
      %v1319 = vmul.f32 %v1298, %v1315
      %v1320 = vadd.f32 %v1290, %v1318
      %v1321 = vadd.f32 %v1291, %v1319
      %v1322 = vld [vmem:[#allocation4 + $0x4] sm:$0xff]
      %v1323 = vld [vmem:[#allocation4 + $0xc] sm:$0xf]
      %v1324 = vld [vmem:[%s3] sm:$0xf]
      %1326 = vset.pattern.permute.xlu0 10
      %1327 = vperm.xlu0 %1326, %v1324
      %v1328 = vpop.permute.xlu0 %1327
      %1332 = vst [vmem:[#allocation1] ss:$2 sm:$0xff] %v1322
      %s1333 = scalar_lea.vmem [#allocation1], 16
      %1334 = vst [vmem:[%s1333] ss:$2 sm:$0xff] %v1323
      %v1335 = vld.sshfl [vmem:[#allocation1] sm:$0xff pattern:$0x75316420]
      %v1336 = vld.sshfl [vmem:[#allocation1 + $0x8] sm:$0xff pattern:$0x75316420]
      %v1337 = vld.sshfl [vmem:[#allocation1 + $0x10] sm:$0xff pattern:$0x75316420]
      %1338 = vrot.lane.b32.xlu0 %v1335, 48
      %v1339 = vpop.permute.xlu0 %1338
      %1340 = vrot.lane.b32.xlu0 %v1336, 48
      %v1341 = vpop.permute.xlu0 %1340
      %1342 = vrot.lane.b32.xlu0 %v1337, 48
      %v1343 = vpop.permute.xlu0 %1342
      %v1344 = vsel %vm1114, %v1339, %v1341
      %v1345 = vsel %vm1114, %v1341, %v1343
      %v1348 = vmul.f32 %v1328, %v1344
      %v1349 = vmul.f32 %v1328, %v1345
      %v1350 = vadd.f32 %v1320, %v1348
      %v1351 = vadd.f32 %v1321, %v1349
      %1352 = vst [vmem:[%s224 + $0x10] sm:$0xf] %v1350
      %1353 = vst [vmem:[%s224 + $0x18] sm:$0xf] %v1351
      %p1354 = scmp.lt.s32.totalorder %s16, 1
      %s1355 = scalar_select %p1354, %s16, 1
      %s1356 = smul.addr %s1355, 4
      %s1357 = smul.addr %s1356, 8
      %s1358 = scalar_lea.vmem %s5, %s1357
      // Predicated region
      $region41: #{tpu_custom_call.1} parent=39 // pred_check
        %p1359 = pneg %p144
      $region42: #{tpu_custom_call.1} parent=39 // pred_check_branch
        %1361 = sbr.rel (%p1359) target = $region44
      $region43: #{tpu_custom_call.1} parent=39 // pred_region
        _
      $region44: #{tpu_custom_call.1} parent=39 // pred_fallthru
        _
    $region40: #{tpu_custom_call.1} parent=5 // pred_fallthru
      _
    %p1362 = scmp.le.s32.totalorder 2, %s11
    // Predicated region
    $region45: #{tpu_custom_call.1} parent=5 // pred_check
      %p1363 = pneg %p1362
    $region46: #{tpu_custom_call.1} parent=5 // pred_check_branch
      %1365 = sbr.rel (%p1363) target = $region48
    $region47: #{tpu_custom_call.1} parent=5 // pred_region
      %s1366 = ssub.s32 %s11, 2
      // Predicated region
      $region49: #{tpu_custom_call.1} parent=47 // pred_check
        %p1367 = pneg %p150
      $region50: #{tpu_custom_call.1} parent=47 // pred_check_branch
        %1369 = sbr.rel (%p1367) target = $region52
      $region51: #{tpu_custom_call.1} parent=47 // pred_region
        %p1370 = scmp.lt.s32.totalorder %s17, 1
        %s1371 = scalar_select %p1370, %s17, 1
        %s1372 = smul.addr %s1371, 4
        %s1373 = smul.addr %s1372, 8
        %s1374 = scalar_lea.vmem %s5, %s1373
      $region52: #{tpu_custom_call.1} parent=47 // pred_fallthru
        _
    $region48: #{tpu_custom_call.1} parent=5 // pred_fallthru
      _
  $region6: #{tpu_custom_call.1} parent=0 // loop_footer
    %s15 = sadd.s32 1, %s11
  $region7: #{tpu_custom_call.1} parent=0 // loop_footer_branch
    %10 = sbr.rel target = $region3
  $region8: #{tpu_custom_call.1} parent=0 // loop_exit
    _

</llo_original>
